<compile_context>
chip_gen: v5e
topology: v5e:2x2
jax: 0.10.0
libtpu: 0.0.40
codegen_flags: <defaults>
</compile_context>

<pallas_src>
import jax
import jax.numpy as jnp
from jax.experimental import pallas as pl
from jax.experimental.pallas import tpu as pltpu

# ---------------- mini-BERT config (small shapes) ----------------
B, S, H = 2, 8, 32          # batch, seq, hidden
NH, HD = 2, 16              # heads, head dim (NH*HD == H)
FF = 64                     # FFN intermediate
L = 2                       # encoder layers
VOCAB = 50
NUM_LABELS = 3              # classifier exists in __init__ but is unused in forward
LN_EPS = 1e-12


def _layernorm(x, g, b):
    mu = jnp.mean(x, axis=-1, keepdims=True)
    var = jnp.mean((x - mu) ** 2, axis=-1, keepdims=True)
    return (x - mu) * jax.lax.rsqrt(var + LN_EPS) * g + b


def _softmax_lastdim(s):
    # Max-subtracted softmax; reciprocal lowers to the EUP (separate slot).
    m = jnp.max(s, axis=-1, keepdims=True)
    e = jnp.exp(s - m)
    return e * pl.reciprocal(jnp.sum(e, axis=-1, keepdims=True), approx=True)


def bert_pooler_kernel(emb_ref, neg_ref,
                       emb_g_ref, emb_b_ref,
                       wq_ref, bq_ref, wk_ref, bk_ref, wv_ref, bv_ref,
                       wo_ref, bo_ref, ln1g_ref, ln1b_ref,
                       wff1_ref, bff1_ref, wff2_ref, bff2_ref,
                       ln2g_ref, ln2b_ref,
                       wp_ref, bp_ref,
                       out_ref):
    # One grid program == one batch row.  emb_ref block is (1, S, H).
    x = _layernorm(emb_ref[0], emb_g_ref[...], emb_b_ref[...])      # (S, H) f32

    # Additive attention mask, hoisted broadcast to (S, S): done once, reused
    # in every layer / head (plain f32 add afterwards, no re-broadcast).
    neg2d = jnp.broadcast_to(neg_ref[0], (S, S))                     # (S, S) f32

    for l in range(L):                       # static unroll over layers
        xb = x.astype(jnp.bfloat16)          # bf16 MXU operands, f32 accumulate

        # Seed the head accumulator with the output-projection bias.
        attn = jnp.broadcast_to(bo_ref[l], (S, H))                   # (S, H) f32
        for n in range(NH):                  # static unroll over heads
            # per-head projections: leading-axis weight indexing only.
            # 1/sqrt(HD) is already folded into wq (init-time constant fold).
            qh = (jnp.dot(xb, wq_ref[l, n],
                          preferred_element_type=jnp.float32)
                  + bq_ref[l, n]).astype(jnp.bfloat16)
            kh = (jnp.dot(xb, wk_ref[l, n],
                          preferred_element_type=jnp.float32)
                  + bk_ref[l, n]).astype(jnp.bfloat16)
            vh = (jnp.dot(xb, wv_ref[l, n],
                          preferred_element_type=jnp.float32)
                  + bv_ref[l, n]).astype(jnp.bfloat16)

            # scores: contract head dim directly (no explicit .T / transpose)
            s = jnp.einsum('qd,kd->qk', qh, kh,
                           preferred_element_type=jnp.float32) + neg2d
            p = _softmax_lastdim(s)                                   # f32
            ctx = jnp.dot(p.astype(jnp.bfloat16), vh,
                          preferred_element_type=jnp.float32)         # (S, HD)
            # per-head output projection, summed == concat-then-matmul
            attn = attn + jnp.dot(ctx.astype(jnp.bfloat16), wo_ref[l, n],
                                  preferred_element_type=jnp.float32)
        x = _layernorm(x + attn, ln1g_ref[l], ln1b_ref[l])

        # ---- feed-forward ----
        hid = jnp.dot(x.astype(jnp.bfloat16), wff1_ref[l],
                      preferred_element_type=jnp.float32) + bff1_ref[l]
        # TODO(synk): HF BERT uses exact erf-GELU; tanh approximation used here
        #             (EUP friendly, small numeric deviation).
        hid = jax.nn.gelu(hid, approximate=True)
        ff = jnp.dot(hid.astype(jnp.bfloat16), wff2_ref[l],
                     preferred_element_type=jnp.float32) + bff2_ref[l]
        x = _layernorm(x + ff, ln2g_ref[l], ln2b_ref[l])

    # ---- pooler: tanh(Linear(hidden of [CLS] token)) ----
    cls = x[0:1, :]                                                   # (1, H)
    pooled = jnp.tanh(jnp.dot(cls.astype(jnp.bfloat16), wp_ref[...],
                              preferred_element_type=jnp.float32) + bp_ref[...])
    out_ref[0] = pooled


def init_params(key):
    ks = jax.random.split(key, 10)

    def norm_f32(k, shape):
        return 0.02 * jax.random.normal(k, shape)

    bf16 = jnp.bfloat16
    scale = 1.0 / (HD ** 0.5)
    return dict(
        word_emb=norm_f32(ks[0], (VOCAB, H)),
        pos_emb=norm_f32(ks[1], (S, H)),
        type_emb=norm_f32(ks[2], (2, H)),
        emb_g=jnp.ones((1, H), jnp.float32),
        emb_b=jnp.zeros((1, H), jnp.float32),
        # attention weights pre-split per head; bf16 for the MXU; the
        # 1/sqrt(HD) score scale is folded into the query weights/bias here
        # (one-time init cost, zero per-call / in-kernel cost).
        wq=(norm_f32(ks[3], (L, NH, H, HD)) * scale).astype(bf16),
        bq=jnp.zeros((L, NH, 1, HD), jnp.float32),      # * scale (zeros -> no-op)
        wk=norm_f32(ks[4], (L, NH, H, HD)).astype(bf16),
        bk=jnp.zeros((L, NH, 1, HD), jnp.float32),
        wv=norm_f32(ks[5], (L, NH, H, HD)).astype(bf16),
        bv=jnp.zeros((L, NH, 1, HD), jnp.float32),
        wo=norm_f32(ks[6], (L, NH, HD, H)).astype(bf16),
        bo=jnp.zeros((L, 1, H), jnp.float32),
        ln1g=jnp.ones((L, 1, H), jnp.float32),
        ln1b=jnp.zeros((L, 1, H), jnp.float32),
        wff1=norm_f32(ks[7], (L, H, FF)).astype(bf16),
        bff1=jnp.zeros((L, 1, FF), jnp.float32),
        wff2=norm_f32(ks[8], (L, FF, H)).astype(bf16),
        bff2=jnp.zeros((L, 1, H), jnp.float32),
        ln2g=jnp.ones((L, 1, H), jnp.float32),
        ln2b=jnp.zeros((L, 1, H), jnp.float32),
        # pooler weight stored already transposed (x @ W.T layout of nn.Linear)
        wp=norm_f32(ks[9], (H, H)).astype(bf16),
        bp=jnp.zeros((1, H), jnp.float32),
        # classifier weights from __init__ (unused in forward; kept for parity)
        w_cls=norm_f32(ks[0], (H, NUM_LABELS)),
        b_cls=jnp.zeros((1, NUM_LABELS), jnp.float32),
    )


def _full_spec(shape):
    """Whole-array block, same block for every grid step (stays resident)."""
    zeros = (0,) * len(shape)
    return pl.BlockSpec(shape, lambda b, _z=zeros: _z)


def classification_network_forward(params, input_ids, attention_mask):
    """Returns BERT pooler_output, exactly like the PyTorch module's forward."""
    # --- glue in plain JAX: embedding gathers + sum, mask prep (free layout) ---
    word = params["word_emb"][input_ids]                      # (B, S, H)
    pos = params["pos_emb"][None, :, :]                       # (1, S, H)
    # token_type_ids assumed all-zero (as in the reference usage)
    tok = params["type_emb"][0][None, None, :]                # (1, 1, H)
    emb = (word + pos + tok).astype(jnp.float32)              # (B, S, H)
    neg_mask = ((1.0 - attention_mask.astype(jnp.float32))
                * (-1e9))[:, None, :]                         # (B, 1, S)

    args = (emb, neg_mask,
            params["emb_g"], params["emb_b"],
            params["wq"], params["bq"], params["wk"], params["bk"],
            params["wv"], params["bv"], params["wo"], params["bo"],
            params["ln1g"], params["ln1b"],
            params["wff1"], params["bff1"], params["wff2"], params["bff2"],
            params["ln2g"], params["ln2b"],
            params["wp"], params["bp"])

    in_specs = [
        pl.BlockSpec((1, S, H), lambda b: (b, 0, 0)),         # emb: per-batch block
        pl.BlockSpec((1, 1, S), lambda b: (b, 0, 0)),         # additive mask
    ] + [_full_spec(a.shape) for a in args[2:]]               # weights: resident

    out_specs = pl.BlockSpec((1, 1, H), lambda b: (b, 0, 0))

    pooled = pl.pallas_call(
        bert_pooler_kernel,
        out_shape=jax.ShapeDtypeStruct((B, 1, H), jnp.float32),
        grid_spec=pltpu.PrefetchScalarGridSpec(
            num_scalar_prefetch=0,
            grid=(B,),
            in_specs=in_specs,
            out_specs=out_specs),
        compiler_params=pltpu.CompilerParams(
            dimension_semantics=("parallel",)),               # 2 TCs on v7x
    )(*args)
    return pooled.reshape(B, H)


if __name__ == "__main__":
    key = jax.random.PRNGKey(0)
    pkey, idkey = jax.random.split(key)
    params = init_params(pkey)

    input_ids = jax.random.randint(idkey, (B, S), 0, VOCAB, dtype=jnp.int32)
    attention_mask = jnp.array(
        [[1, 1, 1, 1, 1, 1, 1, 1],
         [1, 1, 1, 1, 1, 1, 0, 0]], dtype=jnp.int32)          # (B, S)

    pooled = classification_network_forward(params, input_ids, attention_mask)
    pooled = jax.block_until_ready(pooled)
    assert pooled.shape == (B, H) and pooled.dtype == jnp.float32
    assert bool(jnp.all(jnp.isfinite(pooled)))
    print("KERNEL_OK")
</pallas_src>

<mosaic_0001>
module attributes {stable_mosaic.version = 11 : i64} {
  func.func @bert_pooler_kernel(%arg0: i32, %arg1: memref<1x8x32xf32, #tpu.memory_space<vmem>>, %arg2: memref<1x1x8xf32, #tpu.memory_space<vmem>>, %arg3: memref<1x32xf32, #tpu.memory_space<vmem>>, %arg4: memref<1x32xf32, #tpu.memory_space<vmem>>, %arg5: memref<2x2x32x16xbf16, #tpu.memory_space<vmem>>, %arg6: memref<2x2x1x16xf32, #tpu.memory_space<vmem>>, %arg7: memref<2x2x32x16xbf16, #tpu.memory_space<vmem>>, %arg8: memref<2x2x1x16xf32, #tpu.memory_space<vmem>>, %arg9: memref<2x2x32x16xbf16, #tpu.memory_space<vmem>>, %arg10: memref<2x2x1x16xf32, #tpu.memory_space<vmem>>, %arg11: memref<2x2x16x32xbf16, #tpu.memory_space<vmem>>, %arg12: memref<2x1x32xf32, #tpu.memory_space<vmem>>, %arg13: memref<2x1x32xf32, #tpu.memory_space<vmem>>, %arg14: memref<2x1x32xf32, #tpu.memory_space<vmem>>, %arg15: memref<2x32x64xbf16, #tpu.memory_space<vmem>>, %arg16: memref<2x1x64xf32, #tpu.memory_space<vmem>>, %arg17: memref<2x64x32xbf16, #tpu.memory_space<vmem>>, %arg18: memref<2x1x32xf32, #tpu.memory_space<vmem>>, %arg19: memref<2x1x32xf32, #tpu.memory_space<vmem>>, %arg20: memref<2x1x32xf32, #tpu.memory_space<vmem>>, %arg21: memref<32x32xbf16, #tpu.memory_space<vmem>>, %arg22: memref<1x32xf32, #tpu.memory_space<vmem>>, %arg23: memref<1x1x32xf32, #tpu.memory_space<vmem>>) attributes {dimension_semantics = [#tpu.dimension_semantics<parallel>], iteration_bounds = array<i64: 2>, scalar_prefetch = 0 : i64, scratch_operands = 0 : i64, tpu.core_type = #tpu.core_type<tc>, window_params = [{transform_indices = @transform_0, window_bounds = array<i64: 1, 8, 32>}, {transform_indices = @transform_1, window_bounds = array<i64: 1, 1, 8>}, {pipeline_mode = #tpu.pipeline_mode<synchronous>, transform_indices = @transform_2, window_bounds = array<i64: 1, 32>}, {pipeline_mode = #tpu.pipeline_mode<synchronous>, transform_indices = @transform_3, window_bounds = array<i64: 1, 32>}, {pipeline_mode = #tpu.pipeline_mode<synchronous>, transform_indices = @transform_4, window_bounds = array<i64: 2, 2, 32, 16>}, {pipeline_mode = #tpu.pipeline_mode<synchronous>, transform_indices = @transform_5, window_bounds = array<i64: 2, 2, 1, 16>}, {pipeline_mode = #tpu.pipeline_mode<synchronous>, transform_indices = @transform_6, window_bounds = array<i64: 2, 2, 32, 16>}, {pipeline_mode = #tpu.pipeline_mode<synchronous>, transform_indices = @transform_7, window_bounds = array<i64: 2, 2, 1, 16>}, {pipeline_mode = #tpu.pipeline_mode<synchronous>, transform_indices = @transform_8, window_bounds = array<i64: 2, 2, 32, 16>}, {pipeline_mode = #tpu.pipeline_mode<synchronous>, transform_indices = @transform_9, window_bounds = array<i64: 2, 2, 1, 16>}, {pipeline_mode = #tpu.pipeline_mode<synchronous>, transform_indices = @transform_10, window_bounds = array<i64: 2, 2, 16, 32>}, {pipeline_mode = #tpu.pipeline_mode<synchronous>, transform_indices = @transform_11, window_bounds = array<i64: 2, 1, 32>}, {pipeline_mode = #tpu.pipeline_mode<synchronous>, transform_indices = @transform_12, window_bounds = array<i64: 2, 1, 32>}, {pipeline_mode = #tpu.pipeline_mode<synchronous>, transform_indices = @transform_13, window_bounds = array<i64: 2, 1, 32>}, {pipeline_mode = #tpu.pipeline_mode<synchronous>, transform_indices = @transform_14, window_bounds = array<i64: 2, 32, 64>}, {pipeline_mode = #tpu.pipeline_mode<synchronous>, transform_indices = @transform_15, window_bounds = array<i64: 2, 1, 64>}, {pipeline_mode = #tpu.pipeline_mode<synchronous>, transform_indices = @transform_16, window_bounds = array<i64: 2, 64, 32>}, {pipeline_mode = #tpu.pipeline_mode<synchronous>, transform_indices = @transform_17, window_bounds = array<i64: 2, 1, 32>}, {pipeline_mode = #tpu.pipeline_mode<synchronous>, transform_indices = @transform_18, window_bounds = array<i64: 2, 1, 32>}, {pipeline_mode = #tpu.pipeline_mode<synchronous>, transform_indices = @transform_19, window_bounds = array<i64: 2, 1, 32>}, {pipeline_mode = #tpu.pipeline_mode<synchronous>, transform_indices = @transform_20, window_bounds = array<i64: 32, 32>}, {pipeline_mode = #tpu.pipeline_mode<synchronous>, transform_indices = @transform_21, window_bounds = array<i64: 1, 32>}, {transform_indices = @transform_22, window_bounds = array<i64: 1, 1, 32>}]} {
    %c0 = arith.constant 0 : index
    %c0_0 = arith.constant 0 : index
    %c0_1 = arith.constant 0 : index
    %0 = vector.load %arg1[%c0, %c0_0, %c0_1] : memref<1x8x32xf32, #tpu.memory_space<vmem>>, vector<1x8x32xf32>
    %1 = vector.shape_cast %0 : vector<1x8x32xf32> to vector<8x32xf32>
    %c0_2 = arith.constant 0 : index
    %c0_3 = arith.constant 0 : index
    %2 = vector.load %arg3[%c0_2, %c0_3] : memref<1x32xf32, #tpu.memory_space<vmem>>, vector<1x32xf32>
    %c0_4 = arith.constant 0 : index
    %c0_5 = arith.constant 0 : index
    %3 = vector.load %arg4[%c0_4, %c0_5] : memref<1x32xf32, #tpu.memory_space<vmem>>, vector<1x32xf32>
    %cst = arith.constant dense<0.000000e+00> : vector<8xf32>
    %4 = vector.multi_reduction <add>, %1, %cst [1] : vector<8x32xf32> to vector<8xf32>
    %5 = vector.shape_cast %4 : vector<8xf32> to vector<8x1xf32>
    %cst_6 = arith.constant 3.200000e+01 : f32
    %6 = vector.broadcast %cst_6 : f32 to vector<8x1xf32>
    %7 = arith.divf %5, %6 : vector<8x1xf32>
    %8 = vector.broadcast %7 : vector<8x1xf32> to vector<8x32xf32>
    %9 = arith.subf %1, %8 : vector<8x32xf32>
    %10 = arith.mulf %9, %9 : vector<8x32xf32>
    %cst_7 = arith.constant dense<0.000000e+00> : vector<8xf32>
    %11 = vector.multi_reduction <add>, %10, %cst_7 [1] : vector<8x32xf32> to vector<8xf32>
    %12 = vector.shape_cast %11 : vector<8xf32> to vector<8x1xf32>
    %cst_8 = arith.constant 3.200000e+01 : f32
    %13 = vector.broadcast %cst_8 : f32 to vector<8x1xf32>
    %14 = arith.divf %12, %13 : vector<8x1xf32>
    %15 = vector.broadcast %7 : vector<8x1xf32> to vector<8x32xf32>
    %16 = arith.subf %1, %15 : vector<8x32xf32>
    %cst_9 = arith.constant 9.99999996E-13 : f32
    %17 = vector.broadcast %cst_9 : f32 to vector<8x1xf32>
    %18 = arith.addf %14, %17 : vector<8x1xf32>
    %19 = math.rsqrt %18 : vector<8x1xf32>
    %20 = vector.broadcast %19 : vector<8x1xf32> to vector<8x32xf32>
    %21 = arith.mulf %16, %20 : vector<8x32xf32>
    %22 = vector.broadcast %2 : vector<1x32xf32> to vector<8x32xf32>
    %23 = arith.mulf %21, %22 : vector<8x32xf32>
    %24 = vector.broadcast %3 : vector<1x32xf32> to vector<8x32xf32>
    %25 = arith.addf %23, %24 : vector<8x32xf32>
    %c0_10 = arith.constant 0 : index
    %c0_11 = arith.constant 0 : index
    %c0_12 = arith.constant 0 : index
    %26 = vector.load %arg2[%c0_10, %c0_11, %c0_12] : memref<1x1x8xf32, #tpu.memory_space<vmem>>, vector<1x1x8xf32>
    %27 = vector.shape_cast %26 : vector<1x1x8xf32> to vector<1x8xf32>
    %28 = vector.shape_cast %27 : vector<1x8xf32> to vector<1x8xf32>
    %29 = vector.broadcast %28 : vector<1x8xf32> to vector<8x8xf32>
    %30 = arith.truncf %25 : vector<8x32xf32> to vector<8x32xbf16>
    %c0_13 = arith.constant 0 : index
    %c0_14 = arith.constant 0 : index
    %c0_15 = arith.constant 0 : index
    %31 = vector.load %arg12[%c0_13, %c0_14, %c0_15] : memref<2x1x32xf32, #tpu.memory_space<vmem>>, vector<1x1x32xf32>
    %32 = vector.shape_cast %31 : vector<1x1x32xf32> to vector<1x32xf32>
    %33 = vector.shape_cast %32 : vector<1x32xf32> to vector<1x32xf32>
    %34 = vector.broadcast %33 : vector<1x32xf32> to vector<8x32xf32>
    %c0_16 = arith.constant 0 : index
    %c0_17 = arith.constant 0 : index
    %c0_18 = arith.constant 0 : index
    %c0_19 = arith.constant 0 : index
    %35 = vector.load %arg5[%c0_16, %c0_17, %c0_18, %c0_19] : memref<2x2x32x16xbf16, #tpu.memory_space<vmem>>, vector<1x1x32x16xbf16>
    %36 = vector.shape_cast %35 : vector<1x1x32x16xbf16> to vector<32x16xbf16>
    %cst_20 = arith.constant dense<0.000000e+00> : vector<8x16xf32>
    %37 = tpu.matmul %30, %36, %cst_20 {dimension_numbers = #tpu.dot_dimension_numbers<[1], [0], [0], [1], [0, 0, 1, 1], [], []>} : vector<8x32xbf16>, vector<32x16xbf16>, vector<8x16xf32> -> vector<8x16xf32>
    %c0_21 = arith.constant 0 : index
    %c0_22 = arith.constant 0 : index
    %c0_23 = arith.constant 0 : index
    %c0_24 = arith.constant 0 : index
    %38 = vector.load %arg6[%c0_21, %c0_22, %c0_23, %c0_24] : memref<2x2x1x16xf32, #tpu.memory_space<vmem>>, vector<1x1x1x16xf32>
    %39 = vector.shape_cast %38 : vector<1x1x1x16xf32> to vector<1x16xf32>
    %40 = vector.broadcast %39 : vector<1x16xf32> to vector<8x16xf32>
    %41 = arith.addf %37, %40 : vector<8x16xf32>
    %42 = arith.truncf %41 : vector<8x16xf32> to vector<8x16xbf16>
    %c0_25 = arith.constant 0 : index
    %c0_26 = arith.constant 0 : index
    %c0_27 = arith.constant 0 : index
    %c0_28 = arith.constant 0 : index
    %43 = vector.load %arg7[%c0_25, %c0_26, %c0_27, %c0_28] : memref<2x2x32x16xbf16, #tpu.memory_space<vmem>>, vector<1x1x32x16xbf16>
    %44 = vector.shape_cast %43 : vector<1x1x32x16xbf16> to vector<32x16xbf16>
    %cst_29 = arith.constant dense<0.000000e+00> : vector<8x16xf32>
    %45 = tpu.matmul %30, %44, %cst_29 {dimension_numbers = #tpu.dot_dimension_numbers<[1], [0], [0], [1], [0, 0, 1, 1], [], []>} : vector<8x32xbf16>, vector<32x16xbf16>, vector<8x16xf32> -> vector<8x16xf32>
    %c0_30 = arith.constant 0 : index
    %c0_31 = arith.constant 0 : index
    %c0_32 = arith.constant 0 : index
    %c0_33 = arith.constant 0 : index
    %46 = vector.load %arg8[%c0_30, %c0_31, %c0_32, %c0_33] : memref<2x2x1x16xf32, #tpu.memory_space<vmem>>, vector<1x1x1x16xf32>
    %47 = vector.shape_cast %46 : vector<1x1x1x16xf32> to vector<1x16xf32>
    %48 = vector.broadcast %47 : vector<1x16xf32> to vector<8x16xf32>
    %49 = arith.addf %45, %48 : vector<8x16xf32>
    %50 = arith.truncf %49 : vector<8x16xf32> to vector<8x16xbf16>
    %c0_34 = arith.constant 0 : index
    %c0_35 = arith.constant 0 : index
    %c0_36 = arith.constant 0 : index
    %c0_37 = arith.constant 0 : index
    %51 = vector.load %arg9[%c0_34, %c0_35, %c0_36, %c0_37] : memref<2x2x32x16xbf16, #tpu.memory_space<vmem>>, vector<1x1x32x16xbf16>
    %52 = vector.shape_cast %51 : vector<1x1x32x16xbf16> to vector<32x16xbf16>
    %cst_38 = arith.constant dense<0.000000e+00> : vector<8x16xf32>
    %53 = tpu.matmul %30, %52, %cst_38 {dimension_numbers = #tpu.dot_dimension_numbers<[1], [0], [0], [1], [0, 0, 1, 1], [], []>} : vector<8x32xbf16>, vector<32x16xbf16>, vector<8x16xf32> -> vector<8x16xf32>
    %c0_39 = arith.constant 0 : index
    %c0_40 = arith.constant 0 : index
    %c0_41 = arith.constant 0 : index
    %c0_42 = arith.constant 0 : index
    %54 = vector.load %arg10[%c0_39, %c0_40, %c0_41, %c0_42] : memref<2x2x1x16xf32, #tpu.memory_space<vmem>>, vector<1x1x1x16xf32>
    %55 = vector.shape_cast %54 : vector<1x1x1x16xf32> to vector<1x16xf32>
    %56 = vector.broadcast %55 : vector<1x16xf32> to vector<8x16xf32>
    %57 = arith.addf %53, %56 : vector<8x16xf32>
    %58 = arith.truncf %57 : vector<8x16xf32> to vector<8x16xbf16>
    "tpu.trace_start"() <{level = 10 : i32, message = "qd,kd->qk"}> : () -> ()
    %cst_43 = arith.constant dense<0.000000e+00> : vector<8x8xf32>
    %59 = tpu.matmul %42, %50, %cst_43 {dimension_numbers = #tpu.dot_dimension_numbers<[1], [1], [0], [0], [0, 0, 1, 0], [], []>} : vector<8x16xbf16>, vector<8x16xbf16>, vector<8x8xf32> -> vector<8x8xf32>
    "tpu.trace_stop"() : () -> ()
    %60 = arith.addf %59, %29 : vector<8x8xf32>
    %cst_44 = arith.constant dense<0xFF800000> : vector<8xf32>
    %61 = vector.multi_reduction <maximumf>, %60, %cst_44 [1] : vector<8x8xf32> to vector<8xf32>
    %62 = vector.shape_cast %61 : vector<8xf32> to vector<8x1xf32>
    %63 = vector.broadcast %62 : vector<8x1xf32> to vector<8x8xf32>
    %64 = arith.subf %60, %63 : vector<8x8xf32>
    %65 = math.exp %64 : vector<8x8xf32>
    %cst_45 = arith.constant dense<0.000000e+00> : vector<8xf32>
    %66 = vector.multi_reduction <add>, %65, %cst_45 [1] : vector<8x8xf32> to vector<8xf32>
    %67 = vector.shape_cast %66 : vector<8xf32> to vector<8x1xf32>
    %68 = tpu.reciprocal %67 {approx = true} : vector<8x1xf32> -> vector<8x1xf32>
    %69 = vector.broadcast %68 : vector<8x1xf32> to vector<8x8xf32>
    %70 = arith.mulf %65, %69 : vector<8x8xf32>
    %71 = arith.truncf %70 : vector<8x8xf32> to vector<8x8xbf16>
    %cst_46 = arith.constant dense<0.000000e+00> : vector<8x16xf32>
    %72 = tpu.matmul %71, %58, %cst_46 {dimension_numbers = #tpu.dot_dimension_numbers<[1], [0], [0], [1], [0, 0, 1, 1], [], []>} : vector<8x8xbf16>, vector<8x16xbf16>, vector<8x16xf32> -> vector<8x16xf32>
    %73 = arith.truncf %72 : vector<8x16xf32> to vector<8x16xbf16>
    %c0_47 = arith.constant 0 : index
    %c0_48 = arith.constant 0 : index
    %c0_49 = arith.constant 0 : index
    %c0_50 = arith.constant 0 : index
    %74 = vector.load %arg11[%c0_47, %c0_48, %c0_49, %c0_50] : memref<2x2x16x32xbf16, #tpu.memory_space<vmem>>, vector<1x1x16x32xbf16>
    %75 = vector.shape_cast %74 : vector<1x1x16x32xbf16> to vector<16x32xbf16>
    %cst_51 = arith.constant dense<0.000000e+00> : vector<8x32xf32>
    %76 = tpu.matmul %73, %75, %cst_51 {dimension_numbers = #tpu.dot_dimension_numbers<[1], [0], [0], [1], [0, 0, 1, 1], [], []>} : vector<8x16xbf16>, vector<16x32xbf16>, vector<8x32xf32> -> vector<8x32xf32>
    %77 = arith.addf %34, %76 : vector<8x32xf32>
    %c0_52 = arith.constant 0 : index
    %c1 = arith.constant 1 : index
    %c0_53 = arith.constant 0 : index
    %c0_54 = arith.constant 0 : index
    %78 = vector.load %arg5[%c0_52, %c1, %c0_53, %c0_54] : memref<2x2x32x16xbf16, #tpu.memory_space<vmem>>, vector<1x1x32x16xbf16>
    %79 = vector.shape_cast %78 : vector<1x1x32x16xbf16> to vector<32x16xbf16>
    %cst_55 = arith.constant dense<0.000000e+00> : vector<8x16xf32>
    %80 = tpu.matmul %30, %79, %cst_55 {dimension_numbers = #tpu.dot_dimension_numbers<[1], [0], [0], [1], [0, 0, 1, 1], [], []>} : vector<8x32xbf16>, vector<32x16xbf16>, vector<8x16xf32> -> vector<8x16xf32>
    %c0_56 = arith.constant 0 : index
    %c1_57 = arith.constant 1 : index
    %c0_58 = arith.constant 0 : index
    %c0_59 = arith.constant 0 : index
    %81 = vector.load %arg6[%c0_56, %c1_57, %c0_58, %c0_59] : memref<2x2x1x16xf32, #tpu.memory_space<vmem>>, vector<1x1x1x16xf32>
    %82 = vector.shape_cast %81 : vector<1x1x1x16xf32> to vector<1x16xf32>
    %83 = vector.broadcast %82 : vector<1x16xf32> to vector<8x16xf32>
    %84 = arith.addf %80, %83 : vector<8x16xf32>
    %85 = arith.truncf %84 : vector<8x16xf32> to vector<8x16xbf16>
    %c0_60 = arith.constant 0 : index
    %c1_61 = arith.constant 1 : index
    %c0_62 = arith.constant 0 : index
    %c0_63 = arith.constant 0 : index
    %86 = vector.load %arg7[%c0_60, %c1_61, %c0_62, %c0_63] : memref<2x2x32x16xbf16, #tpu.memory_space<vmem>>, vector<1x1x32x16xbf16>
    %87 = vector.shape_cast %86 : vector<1x1x32x16xbf16> to vector<32x16xbf16>
    %cst_64 = arith.constant dense<0.000000e+00> : vector<8x16xf32>
    %88 = tpu.matmul %30, %87, %cst_64 {dimension_numbers = #tpu.dot_dimension_numbers<[1], [0], [0], [1], [0, 0, 1, 1], [], []>} : vector<8x32xbf16>, vector<32x16xbf16>, vector<8x16xf32> -> vector<8x16xf32>
    %c0_65 = arith.constant 0 : index
    %c1_66 = arith.constant 1 : index
    %c0_67 = arith.constant 0 : index
    %c0_68 = arith.constant 0 : index
    %89 = vector.load %arg8[%c0_65, %c1_66, %c0_67, %c0_68] : memref<2x2x1x16xf32, #tpu.memory_space<vmem>>, vector<1x1x1x16xf32>
    %90 = vector.shape_cast %89 : vector<1x1x1x16xf32> to vector<1x16xf32>
    %91 = vector.broadcast %90 : vector<1x16xf32> to vector<8x16xf32>
    %92 = arith.addf %88, %91 : vector<8x16xf32>
    %93 = arith.truncf %92 : vector<8x16xf32> to vector<8x16xbf16>
    %c0_69 = arith.constant 0 : index
    %c1_70 = arith.constant 1 : index
    %c0_71 = arith.constant 0 : index
    %c0_72 = arith.constant 0 : index
    %94 = vector.load %arg9[%c0_69, %c1_70, %c0_71, %c0_72] : memref<2x2x32x16xbf16, #tpu.memory_space<vmem>>, vector<1x1x32x16xbf16>
    %95 = vector.shape_cast %94 : vector<1x1x32x16xbf16> to vector<32x16xbf16>
    %cst_73 = arith.constant dense<0.000000e+00> : vector<8x16xf32>
    %96 = tpu.matmul %30, %95, %cst_73 {dimension_numbers = #tpu.dot_dimension_numbers<[1], [0], [0], [1], [0, 0, 1, 1], [], []>} : vector<8x32xbf16>, vector<32x16xbf16>, vector<8x16xf32> -> vector<8x16xf32>
    %c0_74 = arith.constant 0 : index
    %c1_75 = arith.constant 1 : index
    %c0_76 = arith.constant 0 : index
    %c0_77 = arith.constant 0 : index
    %97 = vector.load %arg10[%c0_74, %c1_75, %c0_76, %c0_77] : memref<2x2x1x16xf32, #tpu.memory_space<vmem>>, vector<1x1x1x16xf32>
    %98 = vector.shape_cast %97 : vector<1x1x1x16xf32> to vector<1x16xf32>
    %99 = vector.broadcast %98 : vector<1x16xf32> to vector<8x16xf32>
    %100 = arith.addf %96, %99 : vector<8x16xf32>
    %101 = arith.truncf %100 : vector<8x16xf32> to vector<8x16xbf16>
    "tpu.trace_start"() <{level = 10 : i32, message = "qd,kd->qk"}> : () -> ()
    %cst_78 = arith.constant dense<0.000000e+00> : vector<8x8xf32>
    %102 = tpu.matmul %85, %93, %cst_78 {dimension_numbers = #tpu.dot_dimension_numbers<[1], [1], [0], [0], [0, 0, 1, 0], [], []>} : vector<8x16xbf16>, vector<8x16xbf16>, vector<8x8xf32> -> vector<8x8xf32>
    "tpu.trace_stop"() : () -> ()
    %103 = arith.addf %102, %29 : vector<8x8xf32>
    %cst_79 = arith.constant dense<0xFF800000> : vector<8xf32>
    %104 = vector.multi_reduction <maximumf>, %103, %cst_79 [1] : vector<8x8xf32> to vector<8xf32>
    %105 = vector.shape_cast %104 : vector<8xf32> to vector<8x1xf32>
    %106 = vector.broadcast %105 : vector<8x1xf32> to vector<8x8xf32>
    %107 = arith.subf %103, %106 : vector<8x8xf32>
    %108 = math.exp %107 : vector<8x8xf32>
    %cst_80 = arith.constant dense<0.000000e+00> : vector<8xf32>
    %109 = vector.multi_reduction <add>, %108, %cst_80 [1] : vector<8x8xf32> to vector<8xf32>
    %110 = vector.shape_cast %109 : vector<8xf32> to vector<8x1xf32>
    %111 = tpu.reciprocal %110 {approx = true} : vector<8x1xf32> -> vector<8x1xf32>
    %112 = vector.broadcast %111 : vector<8x1xf32> to vector<8x8xf32>
    %113 = arith.mulf %108, %112 : vector<8x8xf32>
    %114 = arith.truncf %113 : vector<8x8xf32> to vector<8x8xbf16>
    %cst_81 = arith.constant dense<0.000000e+00> : vector<8x16xf32>
    %115 = tpu.matmul %114, %101, %cst_81 {dimension_numbers = #tpu.dot_dimension_numbers<[1], [0], [0], [1], [0, 0, 1, 1], [], []>} : vector<8x8xbf16>, vector<8x16xbf16>, vector<8x16xf32> -> vector<8x16xf32>
    %116 = arith.truncf %115 : vector<8x16xf32> to vector<8x16xbf16>
    %c0_82 = arith.constant 0 : index
    %c1_83 = arith.constant 1 : index
    %c0_84 = arith.constant 0 : index
    %c0_85 = arith.constant 0 : index
    %117 = vector.load %arg11[%c0_82, %c1_83, %c0_84, %c0_85] : memref<2x2x16x32xbf16, #tpu.memory_space<vmem>>, vector<1x1x16x32xbf16>
    %118 = vector.shape_cast %117 : vector<1x1x16x32xbf16> to vector<16x32xbf16>
    %cst_86 = arith.constant dense<0.000000e+00> : vector<8x32xf32>
    %119 = tpu.matmul %116, %118, %cst_86 {dimension_numbers = #tpu.dot_dimension_numbers<[1], [0], [0], [1], [0, 0, 1, 1], [], []>} : vector<8x16xbf16>, vector<16x32xbf16>, vector<8x32xf32> -> vector<8x32xf32>
    %120 = arith.addf %77, %119 : vector<8x32xf32>
    %121 = arith.addf %25, %120 : vector<8x32xf32>
    %c0_87 = arith.constant 0 : index
    %c0_88 = arith.constant 0 : index
    %c0_89 = arith.constant 0 : index
    %122 = vector.load %arg13[%c0_87, %c0_88, %c0_89] : memref<2x1x32xf32, #tpu.memory_space<vmem>>, vector<1x1x32xf32>
    %123 = vector.shape_cast %122 : vector<1x1x32xf32> to vector<1x32xf32>
    %c0_90 = arith.constant 0 : index
    %c0_91 = arith.constant 0 : index
    %c0_92 = arith.constant 0 : index
    %124 = vector.load %arg14[%c0_90, %c0_91, %c0_92] : memref<2x1x32xf32, #tpu.memory_space<vmem>>, vector<1x1x32xf32>
    %125 = vector.shape_cast %124 : vector<1x1x32xf32> to vector<1x32xf32>
    %cst_93 = arith.constant dense<0.000000e+00> : vector<8xf32>
    %126 = vector.multi_reduction <add>, %121, %cst_93 [1] : vector<8x32xf32> to vector<8xf32>
    %127 = vector.shape_cast %126 : vector<8xf32> to vector<8x1xf32>
    %cst_94 = arith.constant 3.200000e+01 : f32
    %128 = vector.broadcast %cst_94 : f32 to vector<8x1xf32>
    %129 = arith.divf %127, %128 : vector<8x1xf32>
    %130 = vector.broadcast %129 : vector<8x1xf32> to vector<8x32xf32>
    %131 = arith.subf %121, %130 : vector<8x32xf32>
    %132 = arith.mulf %131, %131 : vector<8x32xf32>
    %cst_95 = arith.constant dense<0.000000e+00> : vector<8xf32>
    %133 = vector.multi_reduction <add>, %132, %cst_95 [1] : vector<8x32xf32> to vector<8xf32>
    %134 = vector.shape_cast %133 : vector<8xf32> to vector<8x1xf32>
    %cst_96 = arith.constant 3.200000e+01 : f32
    %135 = vector.broadcast %cst_96 : f32 to vector<8x1xf32>
    %136 = arith.divf %134, %135 : vector<8x1xf32>
    %137 = vector.broadcast %129 : vector<8x1xf32> to vector<8x32xf32>
    %138 = arith.subf %121, %137 : vector<8x32xf32>
    %cst_97 = arith.constant 9.99999996E-13 : f32
    %139 = vector.broadcast %cst_97 : f32 to vector<8x1xf32>
    %140 = arith.addf %136, %139 : vector<8x1xf32>
    %141 = math.rsqrt %140 : vector<8x1xf32>
    %142 = vector.broadcast %141 : vector<8x1xf32> to vector<8x32xf32>
    %143 = arith.mulf %138, %142 : vector<8x32xf32>
    %144 = vector.broadcast %123 : vector<1x32xf32> to vector<8x32xf32>
    %145 = arith.mulf %143, %144 : vector<8x32xf32>
    %146 = vector.broadcast %125 : vector<1x32xf32> to vector<8x32xf32>
    %147 = arith.addf %145, %146 : vector<8x32xf32>
    %148 = arith.truncf %147 : vector<8x32xf32> to vector<8x32xbf16>
    %c0_98 = arith.constant 0 : index
    %c0_99 = arith.constant 0 : index
    %c0_100 = arith.constant 0 : index
    %149 = vector.load %arg15[%c0_98, %c0_99, %c0_100] : memref<2x32x64xbf16, #tpu.memory_space<vmem>>, vector<1x32x64xbf16>
    %150 = vector.shape_cast %149 : vector<1x32x64xbf16> to vector<32x64xbf16>
    %cst_101 = arith.constant dense<0.000000e+00> : vector<8x64xf32>
    %151 = tpu.matmul %148, %150, %cst_101 {dimension_numbers = #tpu.dot_dimension_numbers<[1], [0], [0], [1], [0, 0, 1, 1], [], []>} : vector<8x32xbf16>, vector<32x64xbf16>, vector<8x64xf32> -> vector<8x64xf32>
    %c0_102 = arith.constant 0 : index
    %c0_103 = arith.constant 0 : index
    %c0_104 = arith.constant 0 : index
    %152 = vector.load %arg16[%c0_102, %c0_103, %c0_104] : memref<2x1x64xf32, #tpu.memory_space<vmem>>, vector<1x1x64xf32>
    %153 = vector.shape_cast %152 : vector<1x1x64xf32> to vector<1x64xf32>
    %154 = vector.broadcast %153 : vector<1x64xf32> to vector<8x64xf32>
    %155 = arith.addf %151, %154 : vector<8x64xf32>
    %156 = arith.mulf %155, %155 : vector<8x64xf32>
    %157 = arith.mulf %155, %156 : vector<8x64xf32>
    %cst_105 = arith.constant 4.471500e-02 : f32
    %158 = vector.broadcast %cst_105 : f32 to vector<8x64xf32>
    %159 = arith.mulf %158, %157 : vector<8x64xf32>
    %160 = arith.addf %155, %159 : vector<8x64xf32>
    %cst_106 = arith.constant 0.797884583 : f32
    %161 = vector.broadcast %cst_106 : f32 to vector<8x64xf32>
    %162 = arith.mulf %161, %160 : vector<8x64xf32>
    %163 = math.tanh %162 : vector<8x64xf32>
    %cst_107 = arith.constant 1.000000e+00 : f32
    %164 = vector.broadcast %cst_107 : f32 to vector<8x64xf32>
    %165 = arith.addf %164, %163 : vector<8x64xf32>
    %cst_108 = arith.constant 5.000000e-01 : f32
    %166 = vector.broadcast %cst_108 : f32 to vector<8x64xf32>
    %167 = arith.mulf %166, %165 : vector<8x64xf32>
    %168 = arith.mulf %155, %167 : vector<8x64xf32>
    %169 = arith.truncf %168 : vector<8x64xf32> to vector<8x64xbf16>
    %c0_109 = arith.constant 0 : index
    %c0_110 = arith.constant 0 : index
    %c0_111 = arith.constant 0 : index
    %170 = vector.load %arg17[%c0_109, %c0_110, %c0_111] : memref<2x64x32xbf16, #tpu.memory_space<vmem>>, vector<1x64x32xbf16>
    %171 = vector.shape_cast %170 : vector<1x64x32xbf16> to vector<64x32xbf16>
    %cst_112 = arith.constant dense<0.000000e+00> : vector<8x32xf32>
    %172 = tpu.matmul %169, %171, %cst_112 {dimension_numbers = #tpu.dot_dimension_numbers<[1], [0], [0], [1], [0, 0, 1, 1], [], []>} : vector<8x64xbf16>, vector<64x32xbf16>, vector<8x32xf32> -> vector<8x32xf32>
    %c0_113 = arith.constant 0 : index
    %c0_114 = arith.constant 0 : index
    %c0_115 = arith.constant 0 : index
    %173 = vector.load %arg18[%c0_113, %c0_114, %c0_115] : memref<2x1x32xf32, #tpu.memory_space<vmem>>, vector<1x1x32xf32>
    %174 = vector.shape_cast %173 : vector<1x1x32xf32> to vector<1x32xf32>
    %175 = vector.broadcast %174 : vector<1x32xf32> to vector<8x32xf32>
    %176 = arith.addf %172, %175 : vector<8x32xf32>
    %177 = arith.addf %147, %176 : vector<8x32xf32>
    %c0_116 = arith.constant 0 : index
    %c0_117 = arith.constant 0 : index
    %c0_118 = arith.constant 0 : index
    %178 = vector.load %arg19[%c0_116, %c0_117, %c0_118] : memref<2x1x32xf32, #tpu.memory_space<vmem>>, vector<1x1x32xf32>
    %179 = vector.shape_cast %178 : vector<1x1x32xf32> to vector<1x32xf32>
    %c0_119 = arith.constant 0 : index
    %c0_120 = arith.constant 0 : index
    %c0_121 = arith.constant 0 : index
    %180 = vector.load %arg20[%c0_119, %c0_120, %c0_121] : memref<2x1x32xf32, #tpu.memory_space<vmem>>, vector<1x1x32xf32>
    %181 = vector.shape_cast %180 : vector<1x1x32xf32> to vector<1x32xf32>
    %cst_122 = arith.constant dense<0.000000e+00> : vector<8xf32>
    %182 = vector.multi_reduction <add>, %177, %cst_122 [1] : vector<8x32xf32> to vector<8xf32>
    %183 = vector.shape_cast %182 : vector<8xf32> to vector<8x1xf32>
    %cst_123 = arith.constant 3.200000e+01 : f32
    %184 = vector.broadcast %cst_123 : f32 to vector<8x1xf32>
    %185 = arith.divf %183, %184 : vector<8x1xf32>
    %186 = vector.broadcast %185 : vector<8x1xf32> to vector<8x32xf32>
    %187 = arith.subf %177, %186 : vector<8x32xf32>
    %188 = arith.mulf %187, %187 : vector<8x32xf32>
    %cst_124 = arith.constant dense<0.000000e+00> : vector<8xf32>
    %189 = vector.multi_reduction <add>, %188, %cst_124 [1] : vector<8x32xf32> to vector<8xf32>
    %190 = vector.shape_cast %189 : vector<8xf32> to vector<8x1xf32>
    %cst_125 = arith.constant 3.200000e+01 : f32
    %191 = vector.broadcast %cst_125 : f32 to vector<8x1xf32>
    %192 = arith.divf %190, %191 : vector<8x1xf32>
    %193 = vector.broadcast %185 : vector<8x1xf32> to vector<8x32xf32>
    %194 = arith.subf %177, %193 : vector<8x32xf32>
    %cst_126 = arith.constant 9.99999996E-13 : f32
    %195 = vector.broadcast %cst_126 : f32 to vector<8x1xf32>
    %196 = arith.addf %192, %195 : vector<8x1xf32>
    %197 = math.rsqrt %196 : vector<8x1xf32>
    %198 = vector.broadcast %197 : vector<8x1xf32> to vector<8x32xf32>
    %199 = arith.mulf %194, %198 : vector<8x32xf32>
    %200 = vector.broadcast %179 : vector<1x32xf32> to vector<8x32xf32>
    %201 = arith.mulf %199, %200 : vector<8x32xf32>
    %202 = vector.broadcast %181 : vector<1x32xf32> to vector<8x32xf32>
    %203 = arith.addf %201, %202 : vector<8x32xf32>
    %204 = arith.truncf %203 : vector<8x32xf32> to vector<8x32xbf16>
    %c1_127 = arith.constant 1 : index
    %c0_128 = arith.constant 0 : index
    %c0_129 = arith.constant 0 : index
    %205 = vector.load %arg12[%c1_127, %c0_128, %c0_129] : memref<2x1x32xf32, #tpu.memory_space<vmem>>, vector<1x1x32xf32>
    %206 = vector.shape_cast %205 : vector<1x1x32xf32> to vector<1x32xf32>
    %207 = vector.shape_cast %206 : vector<1x32xf32> to vector<1x32xf32>
    %208 = vector.broadcast %207 : vector<1x32xf32> to vector<8x32xf32>
    %c1_130 = arith.constant 1 : index
    %c0_131 = arith.constant 0 : index
    %c0_132 = arith.constant 0 : index
    %c0_133 = arith.constant 0 : index
    %209 = vector.load %arg5[%c1_130, %c0_131, %c0_132, %c0_133] : memref<2x2x32x16xbf16, #tpu.memory_space<vmem>>, vector<1x1x32x16xbf16>
    %210 = vector.shape_cast %209 : vector<1x1x32x16xbf16> to vector<32x16xbf16>
    %cst_134 = arith.constant dense<0.000000e+00> : vector<8x16xf32>
    %211 = tpu.matmul %204, %210, %cst_134 {dimension_numbers = #tpu.dot_dimension_numbers<[1], [0], [0], [1], [0, 0, 1, 1], [], []>} : vector<8x32xbf16>, vector<32x16xbf16>, vector<8x16xf32> -> vector<8x16xf32>
    %c1_135 = arith.constant 1 : index
    %c0_136 = arith.constant 0 : index
    %c0_137 = arith.constant 0 : index
    %c0_138 = arith.constant 0 : index
    %212 = vector.load %arg6[%c1_135, %c0_136, %c0_137, %c0_138] : memref<2x2x1x16xf32, #tpu.memory_space<vmem>>, vector<1x1x1x16xf32>
    %213 = vector.shape_cast %212 : vector<1x1x1x16xf32> to vector<1x16xf32>
    %214 = vector.broadcast %213 : vector<1x16xf32> to vector<8x16xf32>
    %215 = arith.addf %211, %214 : vector<8x16xf32>
    %216 = arith.truncf %215 : vector<8x16xf32> to vector<8x16xbf16>
    %c1_139 = arith.constant 1 : index
    %c0_140 = arith.constant 0 : index
    %c0_141 = arith.constant 0 : index
    %c0_142 = arith.constant 0 : index
    %217 = vector.load %arg7[%c1_139, %c0_140, %c0_141, %c0_142] : memref<2x2x32x16xbf16, #tpu.memory_space<vmem>>, vector<1x1x32x16xbf16>
    %218 = vector.shape_cast %217 : vector<1x1x32x16xbf16> to vector<32x16xbf16>
    %cst_143 = arith.constant dense<0.000000e+00> : vector<8x16xf32>
    %219 = tpu.matmul %204, %218, %cst_143 {dimension_numbers = #tpu.dot_dimension_numbers<[1], [0], [0], [1], [0, 0, 1, 1], [], []>} : vector<8x32xbf16>, vector<32x16xbf16>, vector<8x16xf32> -> vector<8x16xf32>
    %c1_144 = arith.constant 1 : index
    %c0_145 = arith.constant 0 : index
    %c0_146 = arith.constant 0 : index
    %c0_147 = arith.constant 0 : index
    %220 = vector.load %arg8[%c1_144, %c0_145, %c0_146, %c0_147] : memref<2x2x1x16xf32, #tpu.memory_space<vmem>>, vector<1x1x1x16xf32>
    %221 = vector.shape_cast %220 : vector<1x1x1x16xf32> to vector<1x16xf32>
    %222 = vector.broadcast %221 : vector<1x16xf32> to vector<8x16xf32>
    %223 = arith.addf %219, %222 : vector<8x16xf32>
    %224 = arith.truncf %223 : vector<8x16xf32> to vector<8x16xbf16>
    %c1_148 = arith.constant 1 : index
    %c0_149 = arith.constant 0 : index
    %c0_150 = arith.constant 0 : index
    %c0_151 = arith.constant 0 : index
    %225 = vector.load %arg9[%c1_148, %c0_149, %c0_150, %c0_151] : memref<2x2x32x16xbf16, #tpu.memory_space<vmem>>, vector<1x1x32x16xbf16>
    %226 = vector.shape_cast %225 : vector<1x1x32x16xbf16> to vector<32x16xbf16>
    %cst_152 = arith.constant dense<0.000000e+00> : vector<8x16xf32>
    %227 = tpu.matmul %204, %226, %cst_152 {dimension_numbers = #tpu.dot_dimension_numbers<[1], [0], [0], [1], [0, 0, 1, 1], [], []>} : vector<8x32xbf16>, vector<32x16xbf16>, vector<8x16xf32> -> vector<8x16xf32>
    %c1_153 = arith.constant 1 : index
    %c0_154 = arith.constant 0 : index
    %c0_155 = arith.constant 0 : index
    %c0_156 = arith.constant 0 : index
    %228 = vector.load %arg10[%c1_153, %c0_154, %c0_155, %c0_156] : memref<2x2x1x16xf32, #tpu.memory_space<vmem>>, vector<1x1x1x16xf32>
    %229 = vector.shape_cast %228 : vector<1x1x1x16xf32> to vector<1x16xf32>
    %230 = vector.broadcast %229 : vector<1x16xf32> to vector<8x16xf32>
    %231 = arith.addf %227, %230 : vector<8x16xf32>
    %232 = arith.truncf %231 : vector<8x16xf32> to vector<8x16xbf16>
    "tpu.trace_start"() <{level = 10 : i32, message = "qd,kd->qk"}> : () -> ()
    %cst_157 = arith.constant dense<0.000000e+00> : vector<8x8xf32>
    %233 = tpu.matmul %216, %224, %cst_157 {dimension_numbers = #tpu.dot_dimension_numbers<[1], [1], [0], [0], [0, 0, 1, 0], [], []>} : vector<8x16xbf16>, vector<8x16xbf16>, vector<8x8xf32> -> vector<8x8xf32>
    "tpu.trace_stop"() : () -> ()
    %234 = arith.addf %233, %29 : vector<8x8xf32>
    %cst_158 = arith.constant dense<0xFF800000> : vector<8xf32>
    %235 = vector.multi_reduction <maximumf>, %234, %cst_158 [1] : vector<8x8xf32> to vector<8xf32>
    %236 = vector.shape_cast %235 : vector<8xf32> to vector<8x1xf32>
    %237 = vector.broadcast %236 : vector<8x1xf32> to vector<8x8xf32>
    %238 = arith.subf %234, %237 : vector<8x8xf32>
    %239 = math.exp %238 : vector<8x8xf32>
    %cst_159 = arith.constant dense<0.000000e+00> : vector<8xf32>
    %240 = vector.multi_reduction <add>, %239, %cst_159 [1] : vector<8x8xf32> to vector<8xf32>
    %241 = vector.shape_cast %240 : vector<8xf32> to vector<8x1xf32>
    %242 = tpu.reciprocal %241 {approx = true} : vector<8x1xf32> -> vector<8x1xf32>
    %243 = vector.broadcast %242 : vector<8x1xf32> to vector<8x8xf32>
    %244 = arith.mulf %239, %243 : vector<8x8xf32>
    %245 = arith.truncf %244 : vector<8x8xf32> to vector<8x8xbf16>
    %cst_160 = arith.constant dense<0.000000e+00> : vector<8x16xf32>
    %246 = tpu.matmul %245, %232, %cst_160 {dimension_numbers = #tpu.dot_dimension_numbers<[1], [0], [0], [1], [0, 0, 1, 1], [], []>} : vector<8x8xbf16>, vector<8x16xbf16>, vector<8x16xf32> -> vector<8x16xf32>
    %247 = arith.truncf %246 : vector<8x16xf32> to vector<8x16xbf16>
    %c1_161 = arith.constant 1 : index
    %c0_162 = arith.constant 0 : index
    %c0_163 = arith.constant 0 : index
    %c0_164 = arith.constant 0 : index
    %248 = vector.load %arg11[%c1_161, %c0_162, %c0_163, %c0_164] : memref<2x2x16x32xbf16, #tpu.memory_space<vmem>>, vector<1x1x16x32xbf16>
    %249 = vector.shape_cast %248 : vector<1x1x16x32xbf16> to vector<16x32xbf16>
    %cst_165 = arith.constant dense<0.000000e+00> : vector<8x32xf32>
    %250 = tpu.matmul %247, %249, %cst_165 {dimension_numbers = #tpu.dot_dimension_numbers<[1], [0], [0], [1], [0, 0, 1, 1], [], []>} : vector<8x16xbf16>, vector<16x32xbf16>, vector<8x32xf32> -> vector<8x32xf32>
    %251 = arith.addf %208, %250 : vector<8x32xf32>
    %c1_166 = arith.constant 1 : index
    %c1_167 = arith.constant 1 : index
    %c0_168 = arith.constant 0 : index
    %c0_169 = arith.constant 0 : index
    %252 = vector.load %arg5[%c1_166, %c1_167, %c0_168, %c0_169] : memref<2x2x32x16xbf16, #tpu.memory_space<vmem>>, vector<1x1x32x16xbf16>
    %253 = vector.shape_cast %252 : vector<1x1x32x16xbf16> to vector<32x16xbf16>
    %cst_170 = arith.constant dense<0.000000e+00> : vector<8x16xf32>
    %254 = tpu.matmul %204, %253, %cst_170 {dimension_numbers = #tpu.dot_dimension_numbers<[1], [0], [0], [1], [0, 0, 1, 1], [], []>} : vector<8x32xbf16>, vector<32x16xbf16>, vector<8x16xf32> -> vector<8x16xf32>
    %c1_171 = arith.constant 1 : index
    %c1_172 = arith.constant 1 : index
    %c0_173 = arith.constant 0 : index
    %c0_174 = arith.constant 0 : index
    %255 = vector.load %arg6[%c1_171, %c1_172, %c0_173, %c0_174] : memref<2x2x1x16xf32, #tpu.memory_space<vmem>>, vector<1x1x1x16xf32>
    %256 = vector.shape_cast %255 : vector<1x1x1x16xf32> to vector<1x16xf32>
    %257 = vector.broadcast %256 : vector<1x16xf32> to vector<8x16xf32>
    %258 = arith.addf %254, %257 : vector<8x16xf32>
    %259 = arith.truncf %258 : vector<8x16xf32> to vector<8x16xbf16>
    %c1_175 = arith.constant 1 : index
    %c1_176 = arith.constant 1 : index
    %c0_177 = arith.constant 0 : index
    %c0_178 = arith.constant 0 : index
    %260 = vector.load %arg7[%c1_175, %c1_176, %c0_177, %c0_178] : memref<2x2x32x16xbf16, #tpu.memory_space<vmem>>, vector<1x1x32x16xbf16>
    %261 = vector.shape_cast %260 : vector<1x1x32x16xbf16> to vector<32x16xbf16>
    %cst_179 = arith.constant dense<0.000000e+00> : vector<8x16xf32>
    %262 = tpu.matmul %204, %261, %cst_179 {dimension_numbers = #tpu.dot_dimension_numbers<[1], [0], [0], [1], [0, 0, 1, 1], [], []>} : vector<8x32xbf16>, vector<32x16xbf16>, vector<8x16xf32> -> vector<8x16xf32>
    %c1_180 = arith.constant 1 : index
    %c1_181 = arith.constant 1 : index
    %c0_182 = arith.constant 0 : index
    %c0_183 = arith.constant 0 : index
    %263 = vector.load %arg8[%c1_180, %c1_181, %c0_182, %c0_183] : memref<2x2x1x16xf32, #tpu.memory_space<vmem>>, vector<1x1x1x16xf32>
    %264 = vector.shape_cast %263 : vector<1x1x1x16xf32> to vector<1x16xf32>
    %265 = vector.broadcast %264 : vector<1x16xf32> to vector<8x16xf32>
    %266 = arith.addf %262, %265 : vector<8x16xf32>
    %267 = arith.truncf %266 : vector<8x16xf32> to vector<8x16xbf16>
    %c1_184 = arith.constant 1 : index
    %c1_185 = arith.constant 1 : index
    %c0_186 = arith.constant 0 : index
    %c0_187 = arith.constant 0 : index
    %268 = vector.load %arg9[%c1_184, %c1_185, %c0_186, %c0_187] : memref<2x2x32x16xbf16, #tpu.memory_space<vmem>>, vector<1x1x32x16xbf16>
    %269 = vector.shape_cast %268 : vector<1x1x32x16xbf16> to vector<32x16xbf16>
    %cst_188 = arith.constant dense<0.000000e+00> : vector<8x16xf32>
    %270 = tpu.matmul %204, %269, %cst_188 {dimension_numbers = #tpu.dot_dimension_numbers<[1], [0], [0], [1], [0, 0, 1, 1], [], []>} : vector<8x32xbf16>, vector<32x16xbf16>, vector<8x16xf32> -> vector<8x16xf32>
    %c1_189 = arith.constant 1 : index
    %c1_190 = arith.constant 1 : index
    %c0_191 = arith.constant 0 : index
    %c0_192 = arith.constant 0 : index
    %271 = vector.load %arg10[%c1_189, %c1_190, %c0_191, %c0_192] : memref<2x2x1x16xf32, #tpu.memory_space<vmem>>, vector<1x1x1x16xf32>
    %272 = vector.shape_cast %271 : vector<1x1x1x16xf32> to vector<1x16xf32>
    %273 = vector.broadcast %272 : vector<1x16xf32> to vector<8x16xf32>
    %274 = arith.addf %270, %273 : vector<8x16xf32>
    %275 = arith.truncf %274 : vector<8x16xf32> to vector<8x16xbf16>
    "tpu.trace_start"() <{level = 10 : i32, message = "qd,kd->qk"}> : () -> ()
    %cst_193 = arith.constant dense<0.000000e+00> : vector<8x8xf32>
    %276 = tpu.matmul %259, %267, %cst_193 {dimension_numbers = #tpu.dot_dimension_numbers<[1], [1], [0], [0], [0, 0, 1, 0], [], []>} : vector<8x16xbf16>, vector<8x16xbf16>, vector<8x8xf32> -> vector<8x8xf32>
    "tpu.trace_stop"() : () -> ()
    %277 = arith.addf %276, %29 : vector<8x8xf32>
    %cst_194 = arith.constant dense<0xFF800000> : vector<8xf32>
    %278 = vector.multi_reduction <maximumf>, %277, %cst_194 [1] : vector<8x8xf32> to vector<8xf32>
    %279 = vector.shape_cast %278 : vector<8xf32> to vector<8x1xf32>
    %280 = vector.broadcast %279 : vector<8x1xf32> to vector<8x8xf32>
    %281 = arith.subf %277, %280 : vector<8x8xf32>
    %282 = math.exp %281 : vector<8x8xf32>
    %cst_195 = arith.constant dense<0.000000e+00> : vector<8xf32>
    %283 = vector.multi_reduction <add>, %282, %cst_195 [1] : vector<8x8xf32> to vector<8xf32>
    %284 = vector.shape_cast %283 : vector<8xf32> to vector<8x1xf32>
    %285 = tpu.reciprocal %284 {approx = true} : vector<8x1xf32> -> vector<8x1xf32>
    %286 = vector.broadcast %285 : vector<8x1xf32> to vector<8x8xf32>
    %287 = arith.mulf %282, %286 : vector<8x8xf32>
    %288 = arith.truncf %287 : vector<8x8xf32> to vector<8x8xbf16>
    %cst_196 = arith.constant dense<0.000000e+00> : vector<8x16xf32>
    %289 = tpu.matmul %288, %275, %cst_196 {dimension_numbers = #tpu.dot_dimension_numbers<[1], [0], [0], [1], [0, 0, 1, 1], [], []>} : vector<8x8xbf16>, vector<8x16xbf16>, vector<8x16xf32> -> vector<8x16xf32>
    %290 = arith.truncf %289 : vector<8x16xf32> to vector<8x16xbf16>
    %c1_197 = arith.constant 1 : index
    %c1_198 = arith.constant 1 : index
    %c0_199 = arith.constant 0 : index
    %c0_200 = arith.constant 0 : index
    %291 = vector.load %arg11[%c1_197, %c1_198, %c0_199, %c0_200] : memref<2x2x16x32xbf16, #tpu.memory_space<vmem>>, vector<1x1x16x32xbf16>
    %292 = vector.shape_cast %291 : vector<1x1x16x32xbf16> to vector<16x32xbf16>
    %cst_201 = arith.constant dense<0.000000e+00> : vector<8x32xf32>
    %293 = tpu.matmul %290, %292, %cst_201 {dimension_numbers = #tpu.dot_dimension_numbers<[1], [0], [0], [1], [0, 0, 1, 1], [], []>} : vector<8x16xbf16>, vector<16x32xbf16>, vector<8x32xf32> -> vector<8x32xf32>
    %294 = arith.addf %251, %293 : vector<8x32xf32>
    %295 = arith.addf %203, %294 : vector<8x32xf32>
    %c1_202 = arith.constant 1 : index
    %c0_203 = arith.constant 0 : index
    %c0_204 = arith.constant 0 : index
    %296 = vector.load %arg13[%c1_202, %c0_203, %c0_204] : memref<2x1x32xf32, #tpu.memory_space<vmem>>, vector<1x1x32xf32>
    %297 = vector.shape_cast %296 : vector<1x1x32xf32> to vector<1x32xf32>
    %c1_205 = arith.constant 1 : index
    %c0_206 = arith.constant 0 : index
    %c0_207 = arith.constant 0 : index
    %298 = vector.load %arg14[%c1_205, %c0_206, %c0_207] : memref<2x1x32xf32, #tpu.memory_space<vmem>>, vector<1x1x32xf32>
    %299 = vector.shape_cast %298 : vector<1x1x32xf32> to vector<1x32xf32>
    %cst_208 = arith.constant dense<0.000000e+00> : vector<8xf32>
    %300 = vector.multi_reduction <add>, %295, %cst_208 [1] : vector<8x32xf32> to vector<8xf32>
    %301 = vector.shape_cast %300 : vector<8xf32> to vector<8x1xf32>
    %cst_209 = arith.constant 3.200000e+01 : f32
    %302 = vector.broadcast %cst_209 : f32 to vector<8x1xf32>
    %303 = arith.divf %301, %302 : vector<8x1xf32>
    %304 = vector.broadcast %303 : vector<8x1xf32> to vector<8x32xf32>
    %305 = arith.subf %295, %304 : vector<8x32xf32>
    %306 = arith.mulf %305, %305 : vector<8x32xf32>
    %cst_210 = arith.constant dense<0.000000e+00> : vector<8xf32>
    %307 = vector.multi_reduction <add>, %306, %cst_210 [1] : vector<8x32xf32> to vector<8xf32>
    %308 = vector.shape_cast %307 : vector<8xf32> to vector<8x1xf32>
    %cst_211 = arith.constant 3.200000e+01 : f32
    %309 = vector.broadcast %cst_211 : f32 to vector<8x1xf32>
    %310 = arith.divf %308, %309 : vector<8x1xf32>
    %311 = vector.broadcast %303 : vector<8x1xf32> to vector<8x32xf32>
    %312 = arith.subf %295, %311 : vector<8x32xf32>
    %cst_212 = arith.constant 9.99999996E-13 : f32
    %313 = vector.broadcast %cst_212 : f32 to vector<8x1xf32>
    %314 = arith.addf %310, %313 : vector<8x1xf32>
    %315 = math.rsqrt %314 : vector<8x1xf32>
    %316 = vector.broadcast %315 : vector<8x1xf32> to vector<8x32xf32>
    %317 = arith.mulf %312, %316 : vector<8x32xf32>
    %318 = vector.broadcast %297 : vector<1x32xf32> to vector<8x32xf32>
    %319 = arith.mulf %317, %318 : vector<8x32xf32>
    %320 = vector.broadcast %299 : vector<1x32xf32> to vector<8x32xf32>
    %321 = arith.addf %319, %320 : vector<8x32xf32>
    %322 = arith.truncf %321 : vector<8x32xf32> to vector<8x32xbf16>
    %c1_213 = arith.constant 1 : index
    %c0_214 = arith.constant 0 : index
    %c0_215 = arith.constant 0 : index
    %323 = vector.load %arg15[%c1_213, %c0_214, %c0_215] : memref<2x32x64xbf16, #tpu.memory_space<vmem>>, vector<1x32x64xbf16>
    %324 = vector.shape_cast %323 : vector<1x32x64xbf16> to vector<32x64xbf16>
    %cst_216 = arith.constant dense<0.000000e+00> : vector<8x64xf32>
    %325 = tpu.matmul %322, %324, %cst_216 {dimension_numbers = #tpu.dot_dimension_numbers<[1], [0], [0], [1], [0, 0, 1, 1], [], []>} : vector<8x32xbf16>, vector<32x64xbf16>, vector<8x64xf32> -> vector<8x64xf32>
    %c1_217 = arith.constant 1 : index
    %c0_218 = arith.constant 0 : index
    %c0_219 = arith.constant 0 : index
    %326 = vector.load %arg16[%c1_217, %c0_218, %c0_219] : memref<2x1x64xf32, #tpu.memory_space<vmem>>, vector<1x1x64xf32>
    %327 = vector.shape_cast %326 : vector<1x1x64xf32> to vector<1x64xf32>
    %328 = vector.broadcast %327 : vector<1x64xf32> to vector<8x64xf32>
    %329 = arith.addf %325, %328 : vector<8x64xf32>
    %330 = arith.mulf %329, %329 : vector<8x64xf32>
    %331 = arith.mulf %329, %330 : vector<8x64xf32>
    %cst_220 = arith.constant 4.471500e-02 : f32
    %332 = vector.broadcast %cst_220 : f32 to vector<8x64xf32>
    %333 = arith.mulf %332, %331 : vector<8x64xf32>
    %334 = arith.addf %329, %333 : vector<8x64xf32>
    %cst_221 = arith.constant 0.797884583 : f32
    %335 = vector.broadcast %cst_221 : f32 to vector<8x64xf32>
    %336 = arith.mulf %335, %334 : vector<8x64xf32>
    %337 = math.tanh %336 : vector<8x64xf32>
    %cst_222 = arith.constant 1.000000e+00 : f32
    %338 = vector.broadcast %cst_222 : f32 to vector<8x64xf32>
    %339 = arith.addf %338, %337 : vector<8x64xf32>
    %cst_223 = arith.constant 5.000000e-01 : f32
    %340 = vector.broadcast %cst_223 : f32 to vector<8x64xf32>
    %341 = arith.mulf %340, %339 : vector<8x64xf32>
    %342 = arith.mulf %329, %341 : vector<8x64xf32>
    %343 = arith.truncf %342 : vector<8x64xf32> to vector<8x64xbf16>
    %c1_224 = arith.constant 1 : index
    %c0_225 = arith.constant 0 : index
    %c0_226 = arith.constant 0 : index
    %344 = vector.load %arg17[%c1_224, %c0_225, %c0_226] : memref<2x64x32xbf16, #tpu.memory_space<vmem>>, vector<1x64x32xbf16>
    %345 = vector.shape_cast %344 : vector<1x64x32xbf16> to vector<64x32xbf16>
    %cst_227 = arith.constant dense<0.000000e+00> : vector<8x32xf32>
    %346 = tpu.matmul %343, %345, %cst_227 {dimension_numbers = #tpu.dot_dimension_numbers<[1], [0], [0], [1], [0, 0, 1, 1], [], []>} : vector<8x64xbf16>, vector<64x32xbf16>, vector<8x32xf32> -> vector<8x32xf32>
    %c1_228 = arith.constant 1 : index
    %c0_229 = arith.constant 0 : index
    %c0_230 = arith.constant 0 : index
    %347 = vector.load %arg18[%c1_228, %c0_229, %c0_230] : memref<2x1x32xf32, #tpu.memory_space<vmem>>, vector<1x1x32xf32>
    %348 = vector.shape_cast %347 : vector<1x1x32xf32> to vector<1x32xf32>
    %349 = vector.broadcast %348 : vector<1x32xf32> to vector<8x32xf32>
    %350 = arith.addf %346, %349 : vector<8x32xf32>
    %351 = arith.addf %321, %350 : vector<8x32xf32>
    %c1_231 = arith.constant 1 : index
    %c0_232 = arith.constant 0 : index
    %c0_233 = arith.constant 0 : index
    %352 = vector.load %arg19[%c1_231, %c0_232, %c0_233] : memref<2x1x32xf32, #tpu.memory_space<vmem>>, vector<1x1x32xf32>
    %353 = vector.shape_cast %352 : vector<1x1x32xf32> to vector<1x32xf32>
    %c1_234 = arith.constant 1 : index
    %c0_235 = arith.constant 0 : index
    %c0_236 = arith.constant 0 : index
    %354 = vector.load %arg20[%c1_234, %c0_235, %c0_236] : memref<2x1x32xf32, #tpu.memory_space<vmem>>, vector<1x1x32xf32>
    %355 = vector.shape_cast %354 : vector<1x1x32xf32> to vector<1x32xf32>
    %cst_237 = arith.constant dense<0.000000e+00> : vector<8xf32>
    %356 = vector.multi_reduction <add>, %351, %cst_237 [1] : vector<8x32xf32> to vector<8xf32>
    %357 = vector.shape_cast %356 : vector<8xf32> to vector<8x1xf32>
    %cst_238 = arith.constant 3.200000e+01 : f32
    %358 = vector.broadcast %cst_238 : f32 to vector<8x1xf32>
    %359 = arith.divf %357, %358 : vector<8x1xf32>
    %360 = vector.broadcast %359 : vector<8x1xf32> to vector<8x32xf32>
    %361 = arith.subf %351, %360 : vector<8x32xf32>
    %362 = arith.mulf %361, %361 : vector<8x32xf32>
    %cst_239 = arith.constant dense<0.000000e+00> : vector<8xf32>
    %363 = vector.multi_reduction <add>, %362, %cst_239 [1] : vector<8x32xf32> to vector<8xf32>
    %364 = vector.shape_cast %363 : vector<8xf32> to vector<8x1xf32>
    %cst_240 = arith.constant 3.200000e+01 : f32
    %365 = vector.broadcast %cst_240 : f32 to vector<8x1xf32>
    %366 = arith.divf %364, %365 : vector<8x1xf32>
    %367 = vector.broadcast %359 : vector<8x1xf32> to vector<8x32xf32>
    %368 = arith.subf %351, %367 : vector<8x32xf32>
    %cst_241 = arith.constant 9.99999996E-13 : f32
    %369 = vector.broadcast %cst_241 : f32 to vector<8x1xf32>
    %370 = arith.addf %366, %369 : vector<8x1xf32>
    %371 = math.rsqrt %370 : vector<8x1xf32>
    %372 = vector.broadcast %371 : vector<8x1xf32> to vector<8x32xf32>
    %373 = arith.mulf %368, %372 : vector<8x32xf32>
    %374 = vector.broadcast %353 : vector<1x32xf32> to vector<8x32xf32>
    %375 = arith.mulf %373, %374 : vector<8x32xf32>
    %376 = vector.broadcast %355 : vector<1x32xf32> to vector<8x32xf32>
    %377 = arith.addf %375, %376 : vector<8x32xf32>
    %378 = vector.extract_strided_slice %377 {offsets = [0, 0], sizes = [1, 32], strides = [1, 1]} : vector<8x32xf32> to vector<1x32xf32>
    %379 = arith.truncf %378 : vector<1x32xf32> to vector<1x32xbf16>
    %c0_242 = arith.constant 0 : index
    %c0_243 = arith.constant 0 : index
    %380 = vector.load %arg21[%c0_242, %c0_243] : memref<32x32xbf16, #tpu.memory_space<vmem>>, vector<32x32xbf16>
    %cst_244 = arith.constant dense<0.000000e+00> : vector<1x32xf32>
    %381 = tpu.matmul %379, %380, %cst_244 {dimension_numbers = #tpu.dot_dimension_numbers<[1], [0], [0], [1], [0, 0, 1, 1], [], []>} : vector<1x32xbf16>, vector<32x32xbf16>, vector<1x32xf32> -> vector<1x32xf32>
    %c0_245 = arith.constant 0 : index
    %c0_246 = arith.constant 0 : index
    %382 = vector.load %arg22[%c0_245, %c0_246] : memref<1x32xf32, #tpu.memory_space<vmem>>, vector<1x32xf32>
    %383 = arith.addf %381, %382 : vector<1x32xf32>
    %384 = math.tanh %383 : vector<1x32xf32>
    %c0_247 = arith.constant 0 : index
    %c0_248 = arith.constant 0 : index
    %c0_249 = arith.constant 0 : index
    %385 = vector.load %arg23[%c0_247, %c0_248, %c0_249] : memref<1x1x32xf32, #tpu.memory_space<vmem>>, vector<1x1x32xf32>
    %386 = vector.shape_cast %385 : vector<1x1x32xf32> to vector<1x32xf32>
    %387 = vector.shape_cast %384 : vector<1x32xf32> to vector<1x1x32xf32>
    tpu.vector_store %arg23[%c0_247, %c0_248, %c0_249], %387 {strides = array<i32>} : memref<1x1x32xf32, #tpu.memory_space<vmem>>, vector<1x1x32xf32>,
    return
  }
  func.func @transform_0(%arg0: i32) -> (i32, i32, i32) {
    %c0_i32 = arith.constant 0 : i32
    %c0_i32_0 = arith.constant 0 : i32
    %c0_i32_1 = arith.constant 0 : i32
    return %arg0, %c0_i32, %c0_i32_0 : i32, i32, i32
  }
  func.func @transform_1(%arg0: i32) -> (i32, i32, i32) {
    %c0_i32 = arith.constant 0 : i32
    %c0_i32_0 = arith.constant 0 : i32
    %c0_i32_1 = arith.constant 0 : i32
    return %arg0, %c0_i32, %c0_i32_0 : i32, i32, i32
  }
  func.func @transform_2(%arg0: i32) -> (i32, i32) {
    %c0_i32 = arith.constant 0 : i32
    %c0_i32_0 = arith.constant 0 : i32
    %c0_i32_1 = arith.constant 0 : i32
    return %c0_i32, %c0_i32_0 : i32, i32
  }
  func.func @transform_3(%arg0: i32) -> (i32, i32) {
    %c0_i32 = arith.constant 0 : i32
    %c0_i32_0 = arith.constant 0 : i32
    %c0_i32_1 = arith.constant 0 : i32
    return %c0_i32, %c0_i32_0 : i32, i32
  }
  func.func @transform_4(%arg0: i32) -> (i32, i32, i32, i32) {
    %c0_i32 = arith.constant 0 : i32
    %c0_i32_0 = arith.constant 0 : i32
    %c0_i32_1 = arith.constant 0 : i32
    %c0_i32_2 = arith.constant 0 : i32
    %c0_i32_3 = arith.constant 0 : i32
    return %c0_i32, %c0_i32_0, %c0_i32_1, %c0_i32_2 : i32, i32, i32, i32
  }
  func.func @transform_5(%arg0: i32) -> (i32, i32, i32, i32) {
    %c0_i32 = arith.constant 0 : i32
    %c0_i32_0 = arith.constant 0 : i32
    %c0_i32_1 = arith.constant 0 : i32
    %c0_i32_2 = arith.constant 0 : i32
    %c0_i32_3 = arith.constant 0 : i32
    return %c0_i32, %c0_i32_0, %c0_i32_1, %c0_i32_2 : i32, i32, i32, i32
  }
  func.func @transform_6(%arg0: i32) -> (i32, i32, i32, i32) {
    %c0_i32 = arith.constant 0 : i32
    %c0_i32_0 = arith.constant 0 : i32
    %c0_i32_1 = arith.constant 0 : i32
    %c0_i32_2 = arith.constant 0 : i32
    %c0_i32_3 = arith.constant 0 : i32
    return %c0_i32, %c0_i32_0, %c0_i32_1, %c0_i32_2 : i32, i32, i32, i32
  }
  func.func @transform_7(%arg0: i32) -> (i32, i32, i32, i32) {
    %c0_i32 = arith.constant 0 : i32
    %c0_i32_0 = arith.constant 0 : i32
    %c0_i32_1 = arith.constant 0 : i32
    %c0_i32_2 = arith.constant 0 : i32
    %c0_i32_3 = arith.constant 0 : i32
    return %c0_i32, %c0_i32_0, %c0_i32_1, %c0_i32_2 : i32, i32, i32, i32
  }
  func.func @transform_8(%arg0: i32) -> (i32, i32, i32, i32) {
    %c0_i32 = arith.constant 0 : i32
    %c0_i32_0 = arith.constant 0 : i32
    %c0_i32_1 = arith.constant 0 : i32
    %c0_i32_2 = arith.constant 0 : i32
    %c0_i32_3 = arith.constant 0 : i32
    return %c0_i32, %c0_i32_0, %c0_i32_1, %c0_i32_2 : i32, i32, i32, i32
  }
  func.func @transform_9(%arg0: i32) -> (i32, i32, i32, i32) {
    %c0_i32 = arith.constant 0 : i32
    %c0_i32_0 = arith.constant 0 : i32
    %c0_i32_1 = arith.constant 0 : i32
    %c0_i32_2 = arith.constant 0 : i32
    %c0_i32_3 = arith.constant 0 : i32
    return %c0_i32, %c0_i32_0, %c0_i32_1, %c0_i32_2 : i32, i32, i32, i32
  }
  func.func @transform_10(%arg0: i32) -> (i32, i32, i32, i32) {
    %c0_i32 = arith.constant 0 : i32
    %c0_i32_0 = arith.constant 0 : i32
    %c0_i32_1 = arith.constant 0 : i32
    %c0_i32_2 = arith.constant 0 : i32
    %c0_i32_3 = arith.constant 0 : i32
    return %c0_i32, %c0_i32_0, %c0_i32_1, %c0_i32_2 : i32, i32, i32, i32
  }
  func.func @transform_11(%arg0: i32) -> (i32, i32, i32) {
    %c0_i32 = arith.constant 0 : i32
    %c0_i32_0 = arith.constant 0 : i32
    %c0_i32_1 = arith.constant 0 : i32
    %c0_i32_2 = arith.constant 0 : i32
    return %c0_i32, %c0_i32_0, %c0_i32_1 : i32, i32, i32
  }
  func.func @transform_12(%arg0: i32) -> (i32, i32, i32) {
    %c0_i32 = arith.constant 0 : i32
    %c0_i32_0 = arith.constant 0 : i32
    %c0_i32_1 = arith.constant 0 : i32
    %c0_i32_2 = arith.constant 0 : i32
    return %c0_i32, %c0_i32_0, %c0_i32_1 : i32, i32, i32
  }
  func.func @transform_13(%arg0: i32) -> (i32, i32, i32) {
    %c0_i32 = arith.constant 0 : i32
    %c0_i32_0 = arith.constant 0 : i32
    %c0_i32_1 = arith.constant 0 : i32
    %c0_i32_2 = arith.constant 0 : i32
    return %c0_i32, %c0_i32_0, %c0_i32_1 : i32, i32, i32
  }
  func.func @transform_14(%arg0: i32) -> (i32, i32, i32) {
    %c0_i32 = arith.constant 0 : i32
    %c0_i32_0 = arith.constant 0 : i32
    %c0_i32_1 = arith.constant 0 : i32
    %c0_i32_2 = arith.constant 0 : i32
    return %c0_i32, %c0_i32_0, %c0_i32_1 : i32, i32, i32
  }
  func.func @transform_15(%arg0: i32) -> (i32, i32, i32) {
    %c0_i32 = arith.constant 0 : i32
    %c0_i32_0 = arith.constant 0 : i32
    %c0_i32_1 = arith.constant 0 : i32
    %c0_i32_2 = arith.constant 0 : i32
    return %c0_i32, %c0_i32_0, %c0_i32_1 : i32, i32, i32
  }
  func.func @transform_16(%arg0: i32) -> (i32, i32, i32) {
    %c0_i32 = arith.constant 0 : i32
    %c0_i32_0 = arith.constant 0 : i32
    %c0_i32_1 = arith.constant 0 : i32
    %c0_i32_2 = arith.constant 0 : i32
    return %c0_i32, %c0_i32_0, %c0_i32_1 : i32, i32, i32
  }
  func.func @transform_17(%arg0: i32) -> (i32, i32, i32) {
    %c0_i32 = arith.constant 0 : i32
    %c0_i32_0 = arith.constant 0 : i32
    %c0_i32_1 = arith.constant 0 : i32
    %c0_i32_2 = arith.constant 0 : i32
    return %c0_i32, %c0_i32_0, %c0_i32_1 : i32, i32, i32
  }
  func.func @transform_18(%arg0: i32) -> (i32, i32, i32) {
    %c0_i32 = arith.constant 0 : i32
    %c0_i32_0 = arith.constant 0 : i32
    %c0_i32_1 = arith.constant 0 : i32
    %c0_i32_2 = arith.constant 0 : i32
    return %c0_i32, %c0_i32_0, %c0_i32_1 : i32, i32, i32
  }
  func.func @transform_19(%arg0: i32) -> (i32, i32, i32) {
    %c0_i32 = arith.constant 0 : i32
    %c0_i32_0 = arith.constant 0 : i32
    %c0_i32_1 = arith.constant 0 : i32
    %c0_i32_2 = arith.constant 0 : i32
    return %c0_i32, %c0_i32_0, %c0_i32_1 : i32, i32, i32
  }
  func.func @transform_20(%arg0: i32) -> (i32, i32) {
    %c0_i32 = arith.constant 0 : i32
    %c0_i32_0 = arith.constant 0 : i32
    %c0_i32_1 = arith.constant 0 : i32
    return %c0_i32, %c0_i32_0 : i32, i32
  }
  func.func @transform_21(%arg0: i32) -> (i32, i32) {
    %c0_i32 = arith.constant 0 : i32
    %c0_i32_0 = arith.constant 0 : i32
    %c0_i32_1 = arith.constant 0 : i32
    return %c0_i32, %c0_i32_0 : i32, i32
  }
  func.func @transform_22(%arg0: i32) -> (i32, i32, i32) {
    %c0_i32 = arith.constant 0 : i32
    %c0_i32_0 = arith.constant 0 : i32
    %c0_i32_1 = arith.constant 0 : i32
    return %arg0, %c0_i32, %c0_i32_0 : i32, i32, i32
  }
}

</mosaic_0001>

<llo_original>
// kernel: tpu_custom_call.1
$region0: #{tpu_custom_call.1}
  #allocation0 [shape = 'u32[]', space=smem, size = 0x4, offset = 0x4, fixed_abs, tag = 'smem constant byte address 0x4 - core index']
  #allocation1 [shape = 'u32[72,128]{1,0:T(1,128)}', space=vmem, size = 0x9000, scoped, tag = 'internal scratch']
  %s0 = inlined_call_operand.vmem [shape: f32[2,8,32], index: 0, kind: input, shape index: {}]
  %s1 = inlined_call_operand.vmem [shape: f32[2,1,8], index: 1, kind: input, shape index: {}]
  %s2 = inlined_call_operand.vmem [shape: f32[1,32], index: 2, kind: input, shape index: {}]
  %s3 = inlined_call_operand.vmem [shape: f32[1,32], index: 3, kind: input, shape index: {}]
  %s4 = inlined_call_operand.vmem [shape: bf16[2,2,32,16], index: 4, kind: input, shape index: {}]
  %s5 = inlined_call_operand.vmem [shape: f32[2,2,1,16], index: 5, kind: input, shape index: {}]
  %s6 = inlined_call_operand.vmem [shape: bf16[2,2,32,16], index: 6, kind: input, shape index: {}]
  %s7 = inlined_call_operand.vmem [shape: f32[2,2,1,16], index: 7, kind: input, shape index: {}]
  %s8 = inlined_call_operand.vmem [shape: bf16[2,2,32,16], index: 8, kind: input, shape index: {}]
  %s9 = inlined_call_operand.vmem [shape: f32[2,2,1,16], index: 9, kind: input, shape index: {}]
  %s10 = inlined_call_operand.vmem [shape: bf16[2,2,16,32], index: 10, kind: input, shape index: {}]
  %s11 = inlined_call_operand.vmem [shape: f32[2,1,32], index: 11, kind: input, shape index: {}]
  %s12 = inlined_call_operand.vmem [shape: f32[2,1,32], index: 12, kind: input, shape index: {}]
  %s13 = inlined_call_operand.vmem [shape: f32[2,1,32], index: 13, kind: input, shape index: {}]
  %s14 = inlined_call_operand.vmem [shape: bf16[2,32,64], index: 14, kind: input, shape index: {}]
  %s15 = inlined_call_operand.vmem [shape: f32[2,1,64], index: 15, kind: input, shape index: {}]
  %s16 = inlined_call_operand.vmem [shape: bf16[2,64,32], index: 16, kind: input, shape index: {}]
  %s17 = inlined_call_operand.vmem [shape: f32[2,1,32], index: 17, kind: input, shape index: {}]
  %s18 = inlined_call_operand.vmem [shape: f32[2,1,32], index: 18, kind: input, shape index: {}]
  %s19 = inlined_call_operand.vmem [shape: f32[2,1,32], index: 19, kind: input, shape index: {}]
  %s20 = inlined_call_operand.vmem [shape: bf16[32,32], index: 20, kind: input, shape index: {}]
  %s21 = inlined_call_operand.vmem [shape: f32[1,32], index: 21, kind: input, shape index: {}]
  %s22 = inlined_call_operand.hbm [shape: f32[2,1,32], index: 22, kind: output, shape index: {}]
  %s23 = sld [smem:[#allocation0]]
  $region121: #{tpu_custom_call.1} parent=0
    _
  %s25 = ssub.s32 1, %s23
  %s26 = scalar_select 0, %s25, %s23
  $region1: #{tpu_custom_call.1} parent=0
    #allocation2 [shape = 'u8[1024]{0}', space=vmem, size = 0x400, scoped, tag = 'output window, operand 0']
    #allocation3 [shape = 's32[2]{0}', space=sflag, size = 0x8, scoped, tag = 'scoped memory for tpu_custom_call.1']
    %27 = vsyncpa [#allocation3], 0
    %s28 = scalar_lea.sflag [#allocation3], 1
    %29 = vsyncpa %s28, 0
    loop: start=0, step=1, limit=4
    $region2: #{tpu_custom_call.1} parent=1 // loop_pre_header
      _
    $region3: #{tpu_custom_call.1} parent=1 // loop_header
      %s31 = sphi 0, %s35
      %p32 = scmp.ge.s32.totalorder %s31, 4
      %s41 = sphi 0, %s43
      %s44 = sphi 0, %s41
      %s45 = sphi 0, %s44
      %s61 = sphi 0, %s45
      %s67 = sphi 0, %s69
      %s70 = sphi 0, %s67
      %s71 = sphi 0, %s70
      %s87 = sphi 0, %s71
      %s91 = sphi 0, %s91
      %s93 = sphi 0, %s91
      %s94 = sphi 0, %s93
      %s108 = sphi 0, %s94
      %s112 = sphi 0, %s112
      %s114 = sphi 0, %s112
      %s115 = sphi 0, %s114
      %s129 = sphi 0, %s115
      %s133 = sphi 0, %s133
      %s135 = sphi 0, %s133
      %s136 = sphi 0, %s135
      %s150 = sphi 0, %s136
      %s154 = sphi 0, %s154
      %s156 = sphi 0, %s154
      %s157 = sphi 0, %s156
      %s171 = sphi 0, %s157
      %s175 = sphi 0, %s175
      %s177 = sphi 0, %s175
      %s178 = sphi 0, %s177
      %s192 = sphi 0, %s178
      %s196 = sphi 0, %s196
      %s198 = sphi 0, %s196
      %s199 = sphi 0, %s198
      %s213 = sphi 0, %s199
      %s217 = sphi 0, %s217
      %s219 = sphi 0, %s217
      %s220 = sphi 0, %s219
      %s234 = sphi 0, %s220
      %s238 = sphi 0, %s238
      %s240 = sphi 0, %s238
      %s241 = sphi 0, %s240
      %s255 = sphi 0, %s241
      %s259 = sphi 0, %s259
      %s261 = sphi 0, %s259
      %s262 = sphi 0, %s261
      %s276 = sphi 0, %s262
      %s280 = sphi 0, %s280
      %s282 = sphi 0, %s280
      %s283 = sphi 0, %s282
      %s297 = sphi 0, %s283
      %s301 = sphi 0, %s301
      %s303 = sphi 0, %s301
      %s304 = sphi 0, %s303
      %s318 = sphi 0, %s304
      %s322 = sphi 0, %s322
      %s324 = sphi 0, %s322
      %s325 = sphi 0, %s324
      %s339 = sphi 0, %s325
      %s343 = sphi 0, %s343
      %s345 = sphi 0, %s343
      %s346 = sphi 0, %s345
      %s360 = sphi 0, %s346
      %s364 = sphi 0, %s364
      %s366 = sphi 0, %s364
      %s367 = sphi 0, %s366
      %s381 = sphi 0, %s367
      %s385 = sphi 0, %s385
      %s387 = sphi 0, %s385
      %s388 = sphi 0, %s387
      %s402 = sphi 0, %s388
      %s406 = sphi 0, %s406
      %s408 = sphi 0, %s406
      %s409 = sphi 0, %s408
      %s423 = sphi 0, %s409
      %s427 = sphi 0, %s427
      %s429 = sphi 0, %s427
      %s430 = sphi 0, %s429
      %s444 = sphi 0, %s430
      %s448 = sphi 0, %s448
      %s450 = sphi 0, %s448
      %s451 = sphi 0, %s450
      %s465 = sphi 0, %s451
      %s469 = sphi 0, %s469
      %s471 = sphi 0, %s469
      %s472 = sphi 0, %s471
      %s486 = sphi 0, %s472
      %s490 = sphi 0, %s490
      %s492 = sphi 0, %s490
      %s493 = sphi 0, %s492
      %s507 = sphi 0, %s493
      %s513 = sphi 0, %s515
      %s516 = sphi 0, %s513
      %s517 = sphi 0, %s516
      %s533 = sphi 0, %s517
    $region4: #{tpu_custom_call.1} parent=1 // loop_header_branch
      %34 = sbr.rel (%p32) target = $region8
    $region5: #{tpu_custom_call.1} parent=1 // loop_body
      %s36 = ssub.s32 %s31, 1
      %s37 = ssub.s32 %s31, 2
      %s38 = sadd.s32 %s31, 1
      %s39 = ssub.s32 %s31, %s38
      %p40 = scmp.eq.s32.totalorder %s39, 0
      %s42 = sadd.s32 %s41, 1
      %s43 = scalar_select %p40, %s41, %s42
      %p46 = pneg %p40
      %p47 = scmp.eq.s32.totalorder %s31, 1
      %p48 = por %p46, %p47
      %p49 = scmp.ne.s32.totalorder %s41, %s44
      %p50 = scmp.eq.s32.totalorder %s31, 0
      %p51 = por %p49, %p50
      %p52 = scmp.ne.s32.totalorder %s41, %s44
      %p53 = scmp.eq.s32.totalorder %s36, 1
      %p54 = por %p52, %p53
      %p55 = scmp.ne.s32.totalorder %s44, %s45
      %p56 = scmp.eq.s32.totalorder %s36, 0
      %p57 = por %p55, %p56
      %p58 = scmp.ne.s32.totalorder %s44, %s45
      %p59 = scmp.eq.s32.totalorder %s37, 1
      %p60 = por %p58, %p59
      %p62 = scmp.ne.s32.totalorder %s45, %s61
      %p63 = scmp.eq.s32.totalorder %s37, 0
      %p64 = por %p62, %p63
      %s65 = ssub.s32 %s31, %s38
      %p66 = scmp.eq.s32.totalorder %s65, 0
      %s68 = sadd.s32 %s67, 1
      %s69 = scalar_select %p66, %s67, %s68
      %p72 = pneg %p66
      %p73 = scmp.eq.s32.totalorder %s31, 1
      %p74 = por %p72, %p73
      %p75 = scmp.ne.s32.totalorder %s67, %s70
      %p76 = scmp.eq.s32.totalorder %s31, 0
      %p77 = por %p75, %p76
      %p78 = scmp.ne.s32.totalorder %s67, %s70
      %p79 = scmp.eq.s32.totalorder %s36, 1
      %p80 = por %p78, %p79
      %p81 = scmp.ne.s32.totalorder %s70, %s71
      %p82 = scmp.eq.s32.totalorder %s36, 0
      %p83 = por %p81, %p82
      %p84 = scmp.ne.s32.totalorder %s70, %s71
      %p85 = scmp.eq.s32.totalorder %s37, 1
      %p86 = por %p84, %p85
      %p88 = scmp.ne.s32.totalorder %s71, %s87
      %p89 = scmp.eq.s32.totalorder %s37, 0
      %p90 = por %p88, %p89
      %s92 = sadd.s32 %s91, 1
      %p95 = scmp.eq.s32.totalorder %s31, 1
      %p96 = scmp.ne.s32.totalorder %s91, %s93
      %p97 = scmp.eq.s32.totalorder %s31, 0
      %p98 = por %p96, %p97
      %p99 = scmp.ne.s32.totalorder %s91, %s93
      %p100 = scmp.eq.s32.totalorder %s36, 1
      %p101 = por %p99, %p100
      %p102 = scmp.ne.s32.totalorder %s93, %s94
      %p103 = scmp.eq.s32.totalorder %s36, 0
      %p104 = por %p102, %p103
      %p105 = scmp.ne.s32.totalorder %s93, %s94
      %p106 = scmp.eq.s32.totalorder %s37, 1
      %p107 = por %p105, %p106
      %p109 = scmp.ne.s32.totalorder %s94, %s108
      %p110 = scmp.eq.s32.totalorder %s37, 0
      %p111 = por %p109, %p110
      %s113 = sadd.s32 %s112, 1
      %p116 = scmp.eq.s32.totalorder %s31, 1
      %p117 = scmp.ne.s32.totalorder %s112, %s114
      %p118 = scmp.eq.s32.totalorder %s31, 0
      %p119 = por %p117, %p118
      %p120 = scmp.ne.s32.totalorder %s112, %s114
      %p121 = scmp.eq.s32.totalorder %s36, 1
      %p122 = por %p120, %p121
      %p123 = scmp.ne.s32.totalorder %s114, %s115
      %p124 = scmp.eq.s32.totalorder %s36, 0
      %p125 = por %p123, %p124
      %p126 = scmp.ne.s32.totalorder %s114, %s115
      %p127 = scmp.eq.s32.totalorder %s37, 1
      %p128 = por %p126, %p127
      %p130 = scmp.ne.s32.totalorder %s115, %s129
      %p131 = scmp.eq.s32.totalorder %s37, 0
      %p132 = por %p130, %p131
      %s134 = sadd.s32 %s133, 1
      %p137 = scmp.eq.s32.totalorder %s31, 1
      %p138 = scmp.ne.s32.totalorder %s133, %s135
      %p139 = scmp.eq.s32.totalorder %s31, 0
      %p140 = por %p138, %p139
      %p141 = scmp.ne.s32.totalorder %s133, %s135
      %p142 = scmp.eq.s32.totalorder %s36, 1
      %p143 = por %p141, %p142
      %p144 = scmp.ne.s32.totalorder %s135, %s136
      %p145 = scmp.eq.s32.totalorder %s36, 0
      %p146 = por %p144, %p145
      %p147 = scmp.ne.s32.totalorder %s135, %s136
      %p148 = scmp.eq.s32.totalorder %s37, 1
      %p149 = por %p147, %p148
      %p151 = scmp.ne.s32.totalorder %s136, %s150
      %p152 = scmp.eq.s32.totalorder %s37, 0
      %p153 = por %p151, %p152
      %s155 = sadd.s32 %s154, 1
      %p158 = scmp.eq.s32.totalorder %s31, 1
      %p159 = scmp.ne.s32.totalorder %s154, %s156
      %p160 = scmp.eq.s32.totalorder %s31, 0
      %p161 = por %p159, %p160
      %p162 = scmp.ne.s32.totalorder %s154, %s156
      %p163 = scmp.eq.s32.totalorder %s36, 1
      %p164 = por %p162, %p163
      %p165 = scmp.ne.s32.totalorder %s156, %s157
      %p166 = scmp.eq.s32.totalorder %s36, 0
      %p167 = por %p165, %p166
      %p168 = scmp.ne.s32.totalorder %s156, %s157
      %p169 = scmp.eq.s32.totalorder %s37, 1
      %p170 = por %p168, %p169
      %p172 = scmp.ne.s32.totalorder %s157, %s171
      %p173 = scmp.eq.s32.totalorder %s37, 0
      %p174 = por %p172, %p173
      %s176 = sadd.s32 %s175, 1
      %p179 = scmp.eq.s32.totalorder %s31, 1
      %p180 = scmp.ne.s32.totalorder %s175, %s177
      %p181 = scmp.eq.s32.totalorder %s31, 0
      %p182 = por %p180, %p181
      %p183 = scmp.ne.s32.totalorder %s175, %s177
      %p184 = scmp.eq.s32.totalorder %s36, 1
      %p185 = por %p183, %p184
      %p186 = scmp.ne.s32.totalorder %s177, %s178
      %p187 = scmp.eq.s32.totalorder %s36, 0
      %p188 = por %p186, %p187
      %p189 = scmp.ne.s32.totalorder %s177, %s178
      %p190 = scmp.eq.s32.totalorder %s37, 1
      %p191 = por %p189, %p190
      %p193 = scmp.ne.s32.totalorder %s178, %s192
      %p194 = scmp.eq.s32.totalorder %s37, 0
      %p195 = por %p193, %p194
      %s197 = sadd.s32 %s196, 1
      %p200 = scmp.eq.s32.totalorder %s31, 1
      %p201 = scmp.ne.s32.totalorder %s196, %s198
      %p202 = scmp.eq.s32.totalorder %s31, 0
      %p203 = por %p201, %p202
      %p204 = scmp.ne.s32.totalorder %s196, %s198
      %p205 = scmp.eq.s32.totalorder %s36, 1
      %p206 = por %p204, %p205
      %p207 = scmp.ne.s32.totalorder %s198, %s199
      %p208 = scmp.eq.s32.totalorder %s36, 0
      %p209 = por %p207, %p208
      %p210 = scmp.ne.s32.totalorder %s198, %s199
      %p211 = scmp.eq.s32.totalorder %s37, 1
      %p212 = por %p210, %p211
      %p214 = scmp.ne.s32.totalorder %s199, %s213
      %p215 = scmp.eq.s32.totalorder %s37, 0
      %p216 = por %p214, %p215
      %s218 = sadd.s32 %s217, 1
      %p221 = scmp.eq.s32.totalorder %s31, 1
      %p222 = scmp.ne.s32.totalorder %s217, %s219
      %p223 = scmp.eq.s32.totalorder %s31, 0
      %p224 = por %p222, %p223
      %p225 = scmp.ne.s32.totalorder %s217, %s219
      %p226 = scmp.eq.s32.totalorder %s36, 1
      %p227 = por %p225, %p226
      %p228 = scmp.ne.s32.totalorder %s219, %s220
      %p229 = scmp.eq.s32.totalorder %s36, 0
      %p230 = por %p228, %p229
      %p231 = scmp.ne.s32.totalorder %s219, %s220
      %p232 = scmp.eq.s32.totalorder %s37, 1
      %p233 = por %p231, %p232
      %p235 = scmp.ne.s32.totalorder %s220, %s234
      %p236 = scmp.eq.s32.totalorder %s37, 0
      %p237 = por %p235, %p236
      %s239 = sadd.s32 %s238, 1
      %p242 = scmp.eq.s32.totalorder %s31, 1
      %p243 = scmp.ne.s32.totalorder %s238, %s240
      %p244 = scmp.eq.s32.totalorder %s31, 0
      %p245 = por %p243, %p244
      %p246 = scmp.ne.s32.totalorder %s238, %s240
      %p247 = scmp.eq.s32.totalorder %s36, 1
      %p248 = por %p246, %p247
      %p249 = scmp.ne.s32.totalorder %s240, %s241
      %p250 = scmp.eq.s32.totalorder %s36, 0
      %p251 = por %p249, %p250
      %p252 = scmp.ne.s32.totalorder %s240, %s241
      %p253 = scmp.eq.s32.totalorder %s37, 1
      %p254 = por %p252, %p253
      %p256 = scmp.ne.s32.totalorder %s241, %s255
      %p257 = scmp.eq.s32.totalorder %s37, 0
      %p258 = por %p256, %p257
      %s260 = sadd.s32 %s259, 1
      %p263 = scmp.eq.s32.totalorder %s31, 1
      %p264 = scmp.ne.s32.totalorder %s259, %s261
      %p265 = scmp.eq.s32.totalorder %s31, 0
      %p266 = por %p264, %p265
      %p267 = scmp.ne.s32.totalorder %s259, %s261
      %p268 = scmp.eq.s32.totalorder %s36, 1
      %p269 = por %p267, %p268
      %p270 = scmp.ne.s32.totalorder %s261, %s262
      %p271 = scmp.eq.s32.totalorder %s36, 0
      %p272 = por %p270, %p271
      %p273 = scmp.ne.s32.totalorder %s261, %s262
      %p274 = scmp.eq.s32.totalorder %s37, 1
      %p275 = por %p273, %p274
      %p277 = scmp.ne.s32.totalorder %s262, %s276
      %p278 = scmp.eq.s32.totalorder %s37, 0
      %p279 = por %p277, %p278
      %s281 = sadd.s32 %s280, 1
      %p284 = scmp.eq.s32.totalorder %s31, 1
      %p285 = scmp.ne.s32.totalorder %s280, %s282
      %p286 = scmp.eq.s32.totalorder %s31, 0
      %p287 = por %p285, %p286
      %p288 = scmp.ne.s32.totalorder %s280, %s282
      %p289 = scmp.eq.s32.totalorder %s36, 1
      %p290 = por %p288, %p289
      %p291 = scmp.ne.s32.totalorder %s282, %s283
      %p292 = scmp.eq.s32.totalorder %s36, 0
      %p293 = por %p291, %p292
      %p294 = scmp.ne.s32.totalorder %s282, %s283
      %p295 = scmp.eq.s32.totalorder %s37, 1
      %p296 = por %p294, %p295
      %p298 = scmp.ne.s32.totalorder %s283, %s297
      %p299 = scmp.eq.s32.totalorder %s37, 0
      %p300 = por %p298, %p299
      %s302 = sadd.s32 %s301, 1
      %p305 = scmp.eq.s32.totalorder %s31, 1
      %p306 = scmp.ne.s32.totalorder %s301, %s303
      %p307 = scmp.eq.s32.totalorder %s31, 0
      %p308 = por %p306, %p307
      %p309 = scmp.ne.s32.totalorder %s301, %s303
      %p310 = scmp.eq.s32.totalorder %s36, 1
      %p311 = por %p309, %p310
      %p312 = scmp.ne.s32.totalorder %s303, %s304
      %p313 = scmp.eq.s32.totalorder %s36, 0
      %p314 = por %p312, %p313
      %p315 = scmp.ne.s32.totalorder %s303, %s304
      %p316 = scmp.eq.s32.totalorder %s37, 1
      %p317 = por %p315, %p316
      %p319 = scmp.ne.s32.totalorder %s304, %s318
      %p320 = scmp.eq.s32.totalorder %s37, 0
      %p321 = por %p319, %p320
      %s323 = sadd.s32 %s322, 1
      %p326 = scmp.eq.s32.totalorder %s31, 1
      %p327 = scmp.ne.s32.totalorder %s322, %s324
      %p328 = scmp.eq.s32.totalorder %s31, 0
      %p329 = por %p327, %p328
      %p330 = scmp.ne.s32.totalorder %s322, %s324
      %p331 = scmp.eq.s32.totalorder %s36, 1
      %p332 = por %p330, %p331
      %p333 = scmp.ne.s32.totalorder %s324, %s325
      %p334 = scmp.eq.s32.totalorder %s36, 0
      %p335 = por %p333, %p334
      %p336 = scmp.ne.s32.totalorder %s324, %s325
      %p337 = scmp.eq.s32.totalorder %s37, 1
      %p338 = por %p336, %p337
      %p340 = scmp.ne.s32.totalorder %s325, %s339
      %p341 = scmp.eq.s32.totalorder %s37, 0
      %p342 = por %p340, %p341
      %s344 = sadd.s32 %s343, 1
      %p347 = scmp.eq.s32.totalorder %s31, 1
      %p348 = scmp.ne.s32.totalorder %s343, %s345
      %p349 = scmp.eq.s32.totalorder %s31, 0
      %p350 = por %p348, %p349
      %p351 = scmp.ne.s32.totalorder %s343, %s345
      %p352 = scmp.eq.s32.totalorder %s36, 1
      %p353 = por %p351, %p352
      %p354 = scmp.ne.s32.totalorder %s345, %s346
      %p355 = scmp.eq.s32.totalorder %s36, 0
      %p356 = por %p354, %p355
      %p357 = scmp.ne.s32.totalorder %s345, %s346
      %p358 = scmp.eq.s32.totalorder %s37, 1
      %p359 = por %p357, %p358
      %p361 = scmp.ne.s32.totalorder %s346, %s360
      %p362 = scmp.eq.s32.totalorder %s37, 0
      %p363 = por %p361, %p362
      %s365 = sadd.s32 %s364, 1
      %p368 = scmp.eq.s32.totalorder %s31, 1
      %p369 = scmp.ne.s32.totalorder %s364, %s366
      %p370 = scmp.eq.s32.totalorder %s31, 0
      %p371 = por %p369, %p370
      %p372 = scmp.ne.s32.totalorder %s364, %s366
      %p373 = scmp.eq.s32.totalorder %s36, 1
      %p374 = por %p372, %p373
      %p375 = scmp.ne.s32.totalorder %s366, %s367
      %p376 = scmp.eq.s32.totalorder %s36, 0
      %p377 = por %p375, %p376
      %p378 = scmp.ne.s32.totalorder %s366, %s367
      %p379 = scmp.eq.s32.totalorder %s37, 1
      %p380 = por %p378, %p379
      %p382 = scmp.ne.s32.totalorder %s367, %s381
      %p383 = scmp.eq.s32.totalorder %s37, 0
      %p384 = por %p382, %p383
      %s386 = sadd.s32 %s385, 1
      %p389 = scmp.eq.s32.totalorder %s31, 1
      %p390 = scmp.ne.s32.totalorder %s385, %s387
      %p391 = scmp.eq.s32.totalorder %s31, 0
      %p392 = por %p390, %p391
      %p393 = scmp.ne.s32.totalorder %s385, %s387
      %p394 = scmp.eq.s32.totalorder %s36, 1
      %p395 = por %p393, %p394
      %p396 = scmp.ne.s32.totalorder %s387, %s388
      %p397 = scmp.eq.s32.totalorder %s36, 0
      %p398 = por %p396, %p397
      %p399 = scmp.ne.s32.totalorder %s387, %s388
      %p400 = scmp.eq.s32.totalorder %s37, 1
      %p401 = por %p399, %p400
      %p403 = scmp.ne.s32.totalorder %s388, %s402
      %p404 = scmp.eq.s32.totalorder %s37, 0
      %p405 = por %p403, %p404
      %s407 = sadd.s32 %s406, 1
      %p410 = scmp.eq.s32.totalorder %s31, 1
      %p411 = scmp.ne.s32.totalorder %s406, %s408
      %p412 = scmp.eq.s32.totalorder %s31, 0
      %p413 = por %p411, %p412
      %p414 = scmp.ne.s32.totalorder %s406, %s408
      %p415 = scmp.eq.s32.totalorder %s36, 1
      %p416 = por %p414, %p415
      %p417 = scmp.ne.s32.totalorder %s408, %s409
      %p418 = scmp.eq.s32.totalorder %s36, 0
      %p419 = por %p417, %p418
      %p420 = scmp.ne.s32.totalorder %s408, %s409
      %p421 = scmp.eq.s32.totalorder %s37, 1
      %p422 = por %p420, %p421
      %p424 = scmp.ne.s32.totalorder %s409, %s423
      %p425 = scmp.eq.s32.totalorder %s37, 0
      %p426 = por %p424, %p425
      %s428 = sadd.s32 %s427, 1
      %p431 = scmp.eq.s32.totalorder %s31, 1
      %p432 = scmp.ne.s32.totalorder %s427, %s429
      %p433 = scmp.eq.s32.totalorder %s31, 0
      %p434 = por %p432, %p433
      %p435 = scmp.ne.s32.totalorder %s427, %s429
      %p436 = scmp.eq.s32.totalorder %s36, 1
      %p437 = por %p435, %p436
      %p438 = scmp.ne.s32.totalorder %s429, %s430
      %p439 = scmp.eq.s32.totalorder %s36, 0
      %p440 = por %p438, %p439
      %p441 = scmp.ne.s32.totalorder %s429, %s430
      %p442 = scmp.eq.s32.totalorder %s37, 1
      %p443 = por %p441, %p442
      %p445 = scmp.ne.s32.totalorder %s430, %s444
      %p446 = scmp.eq.s32.totalorder %s37, 0
      %p447 = por %p445, %p446
      %s449 = sadd.s32 %s448, 1
      %p452 = scmp.eq.s32.totalorder %s31, 1
      %p453 = scmp.ne.s32.totalorder %s448, %s450
      %p454 = scmp.eq.s32.totalorder %s31, 0
      %p455 = por %p453, %p454
      %p456 = scmp.ne.s32.totalorder %s448, %s450
      %p457 = scmp.eq.s32.totalorder %s36, 1
      %p458 = por %p456, %p457
      %p459 = scmp.ne.s32.totalorder %s450, %s451
      %p460 = scmp.eq.s32.totalorder %s36, 0
      %p461 = por %p459, %p460
      %p462 = scmp.ne.s32.totalorder %s450, %s451
      %p463 = scmp.eq.s32.totalorder %s37, 1
      %p464 = por %p462, %p463
      %p466 = scmp.ne.s32.totalorder %s451, %s465
      %p467 = scmp.eq.s32.totalorder %s37, 0
      %p468 = por %p466, %p467
      %s470 = sadd.s32 %s469, 1
      %p473 = scmp.eq.s32.totalorder %s31, 1
      %p474 = scmp.ne.s32.totalorder %s469, %s471
      %p475 = scmp.eq.s32.totalorder %s31, 0
      %p476 = por %p474, %p475
      %p477 = scmp.ne.s32.totalorder %s469, %s471
      %p478 = scmp.eq.s32.totalorder %s36, 1
      %p479 = por %p477, %p478
      %p480 = scmp.ne.s32.totalorder %s471, %s472
      %p481 = scmp.eq.s32.totalorder %s36, 0
      %p482 = por %p480, %p481
      %p483 = scmp.ne.s32.totalorder %s471, %s472
      %p484 = scmp.eq.s32.totalorder %s37, 1
      %p485 = por %p483, %p484
      %p487 = scmp.ne.s32.totalorder %s472, %s486
      %p488 = scmp.eq.s32.totalorder %s37, 0
      %p489 = por %p487, %p488
      %s491 = sadd.s32 %s490, 1
      %p494 = scmp.eq.s32.totalorder %s31, 1
      %p495 = scmp.ne.s32.totalorder %s490, %s492
      %p496 = scmp.eq.s32.totalorder %s31, 0
      %p497 = por %p495, %p496
      %p498 = scmp.ne.s32.totalorder %s490, %s492
      %p499 = scmp.eq.s32.totalorder %s36, 1
      %p500 = por %p498, %p499
      %p501 = scmp.ne.s32.totalorder %s492, %s493
      %p502 = scmp.eq.s32.totalorder %s36, 0
      %p503 = por %p501, %p502
      %p504 = scmp.ne.s32.totalorder %s492, %s493
      %p505 = scmp.eq.s32.totalorder %s37, 1
      %p506 = por %p504, %p505
      %p508 = scmp.ne.s32.totalorder %s493, %s507
      %p509 = scmp.eq.s32.totalorder %s37, 0
      %p510 = por %p508, %p509
      %s511 = ssub.s32 %s31, %s38
      %p512 = scmp.eq.s32.totalorder %s511, 0
      %s514 = sadd.s32 %s513, 1
      %s515 = scalar_select %p512, %s513, %s514
      %p518 = pneg %p512
      %p519 = scmp.eq.s32.totalorder %s31, 1
      %p520 = por %p518, %p519
      %p521 = scmp.ne.s32.totalorder %s513, %s516
      %p522 = scmp.eq.s32.totalorder %s31, 0
      %p523 = por %p521, %p522
      %p524 = scmp.ne.s32.totalorder %s513, %s516
      %p525 = scmp.eq.s32.totalorder %s36, 1
      %p526 = por %p524, %p525
      %p527 = scmp.ne.s32.totalorder %s516, %s517
      %p528 = scmp.eq.s32.totalorder %s36, 0
      %p529 = por %p527, %p528
      %p530 = scmp.ne.s32.totalorder %s516, %s517
      %p531 = scmp.eq.s32.totalorder %s37, 1
      %p532 = por %p530, %p531
      %p534 = scmp.ne.s32.totalorder %s517, %s533
      %p535 = scmp.eq.s32.totalorder %s37, 0
      %p536 = por %p534, %p535
      %p537 = scmp.le.s32.totalorder 1, %s31
      %p538 = scmp.lt.s32.totalorder %s31, 3
      %p539 = pnand %p537, %p538
      %p540 = pneg %p539
      // Predicated region
      $region9: #{tpu_custom_call.1} parent=5 // pred_check
        _
      $region10: #{tpu_custom_call.1} parent=5 // pred_check_branch
        %542 = sbr.rel (%p539) target = $region12
      $region11: #{tpu_custom_call.1} parent=5 // pred_region
        %s543 = ssub.s32 %s31, 1
        // Predicated region
        $region13: #{tpu_custom_call.1} parent=11 // pred_check
          %p544 = pneg %p104
        $region14: #{tpu_custom_call.1} parent=11 // pred_check_branch
          %546 = sbr.rel (%p544) target = $region16
        $region15: #{tpu_custom_call.1} parent=11 // pred_region
          _
        $region16: #{tpu_custom_call.1} parent=11 // pred_fallthru
          _
        // Predicated region
        $region17: #{tpu_custom_call.1} parent=11 // pred_check
          %p547 = pneg %p125
        $region18: #{tpu_custom_call.1} parent=11 // pred_check_branch
          %549 = sbr.rel (%p547) target = $region20
        $region19: #{tpu_custom_call.1} parent=11 // pred_region
          _
        $region20: #{tpu_custom_call.1} parent=11 // pred_fallthru
          _
        // Predicated region
        $region21: #{tpu_custom_call.1} parent=11 // pred_check
          %p550 = pneg %p146
        $region22: #{tpu_custom_call.1} parent=11 // pred_check_branch
          %552 = sbr.rel (%p550) target = $region24
        $region23: #{tpu_custom_call.1} parent=11 // pred_region
          _
        $region24: #{tpu_custom_call.1} parent=11 // pred_fallthru
          _
        // Predicated region
        $region25: #{tpu_custom_call.1} parent=11 // pred_check
          %p553 = pneg %p167
        $region26: #{tpu_custom_call.1} parent=11 // pred_check_branch
          %555 = sbr.rel (%p553) target = $region28
        $region27: #{tpu_custom_call.1} parent=11 // pred_region
          _
        $region28: #{tpu_custom_call.1} parent=11 // pred_fallthru
          _
        // Predicated region
        $region29: #{tpu_custom_call.1} parent=11 // pred_check
          %p556 = pneg %p188
        $region30: #{tpu_custom_call.1} parent=11 // pred_check_branch
          %558 = sbr.rel (%p556) target = $region32
        $region31: #{tpu_custom_call.1} parent=11 // pred_region
          _
        $region32: #{tpu_custom_call.1} parent=11 // pred_fallthru
          _
        // Predicated region
        $region33: #{tpu_custom_call.1} parent=11 // pred_check
          %p559 = pneg %p209
        $region34: #{tpu_custom_call.1} parent=11 // pred_check_branch
          %561 = sbr.rel (%p559) target = $region36
        $region35: #{tpu_custom_call.1} parent=11 // pred_region
          _
        $region36: #{tpu_custom_call.1} parent=11 // pred_fallthru
          _
        // Predicated region
        $region37: #{tpu_custom_call.1} parent=11 // pred_check
          %p562 = pneg %p230
        $region38: #{tpu_custom_call.1} parent=11 // pred_check_branch
          %564 = sbr.rel (%p562) target = $region40
        $region39: #{tpu_custom_call.1} parent=11 // pred_region
          _
        $region40: #{tpu_custom_call.1} parent=11 // pred_fallthru
          _
        // Predicated region
        $region41: #{tpu_custom_call.1} parent=11 // pred_check
          %p565 = pneg %p251
        $region42: #{tpu_custom_call.1} parent=11 // pred_check_branch
          %567 = sbr.rel (%p565) target = $region44
        $region43: #{tpu_custom_call.1} parent=11 // pred_region
          _
        $region44: #{tpu_custom_call.1} parent=11 // pred_fallthru
          _
        // Predicated region
        $region45: #{tpu_custom_call.1} parent=11 // pred_check
          %p568 = pneg %p272
        $region46: #{tpu_custom_call.1} parent=11 // pred_check_branch
          %570 = sbr.rel (%p568) target = $region48
        $region47: #{tpu_custom_call.1} parent=11 // pred_region
          _
        $region48: #{tpu_custom_call.1} parent=11 // pred_fallthru
          _
        // Predicated region
        $region49: #{tpu_custom_call.1} parent=11 // pred_check
          %p571 = pneg %p293
        $region50: #{tpu_custom_call.1} parent=11 // pred_check_branch
          %573 = sbr.rel (%p571) target = $region52
        $region51: #{tpu_custom_call.1} parent=11 // pred_region
          _
        $region52: #{tpu_custom_call.1} parent=11 // pred_fallthru
          _
        // Predicated region
        $region53: #{tpu_custom_call.1} parent=11 // pred_check
          %p574 = pneg %p314
        $region54: #{tpu_custom_call.1} parent=11 // pred_check_branch
          %576 = sbr.rel (%p574) target = $region56
        $region55: #{tpu_custom_call.1} parent=11 // pred_region
          _
        $region56: #{tpu_custom_call.1} parent=11 // pred_fallthru
          _
        // Predicated region
        $region57: #{tpu_custom_call.1} parent=11 // pred_check
          %p577 = pneg %p335
        $region58: #{tpu_custom_call.1} parent=11 // pred_check_branch
          %579 = sbr.rel (%p577) target = $region60
        $region59: #{tpu_custom_call.1} parent=11 // pred_region
          _
        $region60: #{tpu_custom_call.1} parent=11 // pred_fallthru
          _
        // Predicated region
        $region61: #{tpu_custom_call.1} parent=11 // pred_check
          %p580 = pneg %p356
        $region62: #{tpu_custom_call.1} parent=11 // pred_check_branch
          %582 = sbr.rel (%p580) target = $region64
        $region63: #{tpu_custom_call.1} parent=11 // pred_region
          _
        $region64: #{tpu_custom_call.1} parent=11 // pred_fallthru
          _
        // Predicated region
        $region65: #{tpu_custom_call.1} parent=11 // pred_check
          %p583 = pneg %p377
        $region66: #{tpu_custom_call.1} parent=11 // pred_check_branch
          %585 = sbr.rel (%p583) target = $region68
        $region67: #{tpu_custom_call.1} parent=11 // pred_region
          _
        $region68: #{tpu_custom_call.1} parent=11 // pred_fallthru
          _
        // Predicated region
        $region69: #{tpu_custom_call.1} parent=11 // pred_check
          %p586 = pneg %p398
        $region70: #{tpu_custom_call.1} parent=11 // pred_check_branch
          %588 = sbr.rel (%p586) target = $region72
        $region71: #{tpu_custom_call.1} parent=11 // pred_region
          _
        $region72: #{tpu_custom_call.1} parent=11 // pred_fallthru
          _
        // Predicated region
        $region73: #{tpu_custom_call.1} parent=11 // pred_check
          %p589 = pneg %p419
        $region74: #{tpu_custom_call.1} parent=11 // pred_check_branch
          %591 = sbr.rel (%p589) target = $region76
        $region75: #{tpu_custom_call.1} parent=11 // pred_region
          _
        $region76: #{tpu_custom_call.1} parent=11 // pred_fallthru
          _
        // Predicated region
        $region77: #{tpu_custom_call.1} parent=11 // pred_check
          %p592 = pneg %p440
        $region78: #{tpu_custom_call.1} parent=11 // pred_check_branch
          %594 = sbr.rel (%p592) target = $region80
        $region79: #{tpu_custom_call.1} parent=11 // pred_region
          _
        $region80: #{tpu_custom_call.1} parent=11 // pred_fallthru
          _
        // Predicated region
        $region81: #{tpu_custom_call.1} parent=11 // pred_check
          %p595 = pneg %p461
        $region82: #{tpu_custom_call.1} parent=11 // pred_check_branch
          %597 = sbr.rel (%p595) target = $region84
        $region83: #{tpu_custom_call.1} parent=11 // pred_region
          _
        $region84: #{tpu_custom_call.1} parent=11 // pred_fallthru
          _
        // Predicated region
        $region85: #{tpu_custom_call.1} parent=11 // pred_check
          %p598 = pneg %p482
        $region86: #{tpu_custom_call.1} parent=11 // pred_check_branch
          %600 = sbr.rel (%p598) target = $region88
        $region87: #{tpu_custom_call.1} parent=11 // pred_region
          _
        $region88: #{tpu_custom_call.1} parent=11 // pred_fallthru
          _
        // Predicated region
        $region89: #{tpu_custom_call.1} parent=11 // pred_check
          %p601 = pneg %p503
        $region90: #{tpu_custom_call.1} parent=11 // pred_check_branch
          %603 = sbr.rel (%p601) target = $region92
        $region91: #{tpu_custom_call.1} parent=11 // pred_region
          _
        $region92: #{tpu_custom_call.1} parent=11 // pred_fallthru
          _
      $region12: #{tpu_custom_call.1} parent=5 // pred_fallthru
        _
      %p604 = scmp.lt.s32.totalorder %s31, 2
      // Predicated region
      $region93: #{tpu_custom_call.1} parent=5 // pred_check
        %p605 = pneg %p604
      $region94: #{tpu_custom_call.1} parent=5 // pred_check_branch
        %607 = sbr.rel (%p605) target = $region96
      $region95: #{tpu_custom_call.1} parent=5 // pred_region
        // Predicated region
        $region97: #{tpu_custom_call.1} parent=95 // pred_check
          %p608 = pneg %p51
        $region98: #{tpu_custom_call.1} parent=95 // pred_check_branch
          %610 = sbr.rel (%p608) target = $region100
        $region99: #{tpu_custom_call.1} parent=95 // pred_region
          %p611 = scmp.lt.s32.totalorder %s31, 1
          %s612 = scalar_select %p611, %s31, 1
          %s613 = smul.addr %s612, 8
          %s614 = scalar_lea.vmem %s0, %s613
        $region100: #{tpu_custom_call.1} parent=95 // pred_fallthru
          _
        // Predicated region
        $region101: #{tpu_custom_call.1} parent=95 // pred_check
          %p615 = pneg %p77
        $region102: #{tpu_custom_call.1} parent=95 // pred_check_branch
          %617 = sbr.rel (%p615) target = $region104
        $region103: #{tpu_custom_call.1} parent=95 // pred_region
          %p618 = scmp.lt.s32.totalorder %s31, 1
          %s619 = scalar_select %p618, %s31, 1
          %s620 = scalar_lea.vmem %s1, %s619
        $region104: #{tpu_custom_call.1} parent=95 // pred_fallthru
          _
      $region96: #{tpu_custom_call.1} parent=5 // pred_fallthru
        _
      %p621 = scmp.le.s32.totalorder 1, %s31
      %p622 = scmp.lt.s32.totalorder %s31, 3
      %p623 = pnand %p621, %p622
      %p624 = pneg %p623
      // Predicated region
      $region105: #{tpu_custom_call.1} parent=5 // pred_check
        _
      $region106: #{tpu_custom_call.1} parent=5 // pred_check_branch
        %626 = sbr.rel (%p623) target = $region108
      $region107: #{tpu_custom_call.1} parent=5 // pred_region
        %s627 = ssub.s32 %s31, 1
        %p628 = scmp.lt.s32.totalorder %s36, 1
        %s629 = scalar_select %p628, %s36, 1
        %s630 = smul.addr %s629, 8
        %s631 = scalar_lea.vmem %s0, %s630
        %p632 = pneg %p57
        %p633 = pneg %p54
        %p634 = scmp.lt.s32.totalorder %s36, 1
        %s635 = scalar_select %p634, %s36, 1
        %s636 = scalar_lea.vmem %s1, %s635
        %p637 = pneg %p83
        %p638 = pneg %p80
        %p639 = pneg %p104
        %p640 = pneg %p101
        %p641 = pneg %p125
        %p642 = pneg %p122
        %p643 = pneg %p146
        %p644 = pneg %p143
        %p645 = pneg %p167
        %p646 = pneg %p164
        %p647 = pneg %p188
        %p648 = pneg %p185
        %p649 = pneg %p209
        %p650 = pneg %p206
        %p651 = pneg %p230
        %p652 = pneg %p227
        %p653 = pneg %p251
        %p654 = pneg %p248
        %p655 = pneg %p272
        %p656 = pneg %p269
        %p657 = pneg %p293
        %p658 = pneg %p290
        %p659 = pneg %p314
        %p660 = pneg %p311
        %p661 = pneg %p335
        %p662 = pneg %p332
        %p663 = pneg %p356
        %p664 = pneg %p353
        %p665 = pneg %p377
        %p666 = pneg %p374
        %p667 = pneg %p398
        %p668 = pneg %p395
        %p669 = pneg %p419
        %p670 = pneg %p416
        %p671 = pneg %p440
        %p672 = pneg %p437
        %p673 = pneg %p461
        %p674 = pneg %p458
        %p675 = pneg %p482
        %p676 = pneg %p479
        %p677 = pneg %p503
        %p678 = pneg %p500
        %p679 = pneg %p529
        %p680 = pneg %p526
        %s681 = sand.u32 %s516, 1
        %s682 = scalar_lea.sflag [#allocation3], %s681
        %s683 = sand.u32 %s516, 1
        %s684 = scalar_lea.vmem [#allocation2], %s683
        %p685 = scmp.lt.s32.totalorder %s36, 1
        %s686 = scalar_select %p685, %s36, 1
        %s687 = smul.addr %s686, 8
        %s688 = scalar_lea.vmem %s0, %s687
        %p689 = scmp.lt.s32.totalorder %s36, 1
        %s690 = scalar_select %p689, %s36, 1
        %s691 = scalar_lea.vmem %s1, %s690
        %v693 = vld [vmem:[%s688] sm:$0xff]
        %v694 = vld [vmem:[%s2] sm:$0x1]
        %v695 = vld [vmem:[%s3] sm:$0x1]
        %vm696 = vcmask 261120
        %v697 = vsel %vm696, %v693, 0.0
        %698 = vadd.xlane.f32.xlu0 %v697
        %v699 = vpop.xlane.xlu0 %698
        %v700 = vrcp.pop 32.0
        %v701 = vmul.f32 32.0, %v700
        %v702 = vsub.f32 1.0, %v701
        %v703 = vmul.f32 %v700, %v702
        %v704 = vadd.f32 %v700, %v703
        %vm705 = vweird.f32 %v700
        %v706 = vsel %vm705, %v700, %v704
        %v707 = vmul.f32 %v699, %v706
        %v708 = vsub.f32 %v693, %v707
        %v709 = vmul.f32 %v708, %v708
        %v710 = vsel %vm696, %v709, 0.0
        %711 = vadd.xlane.f32.xlu0 %v710
        %v712 = vpop.xlane.xlu0 %711
        %v713 = vmul.f32 %v712, %v706
        %v714 = vadd.f32 %v713, 1e-12
        %v715 = vrsqrt.pop %v714
        %v716 = vmul.f32 %v715, %v714
        %v717 = vmul.f32 %v716, %v715
        %v718 = vmul.f32 0.5, %v717
        %v719 = vsub.f32 1.5, %v718
        %v720 = vmul.f32 %v715, %v719
        %vm721 = vweird.f32 %v714
        %vm722 = vweird.f32 %v715
        %vm723 = vmor %vm721, %vm722
        %v724 = vsel %vm723, %v715, %v720
        %v725 = vmul.f32 %v708, %v724
        %v727 = vperm.slane %v694, 0
        %v729 = vmul.f32 %v725, %v727
        %v731 = vperm.slane %v695, 0
        %v733 = vadd.f32 %v729, %v731
        %v734 = vld [vmem:[%s691] sm:$0x1]
        %v736 = vperm.slane %v734, 0
        %v738 = vpack.c.bf16 %v733, %v733
        %v739 = vld [vmem:[%s11] sm:$0x1]
        %v741 = vperm.slane %v739, 0
        %v743 = vld [vmem:[%s4] sm:$0xf]
        %v744 = vld [vmem:[%s4 + $0x4] sm:$0xf]
        %v745 = vld [vmem:[%s4 + $0x8] sm:$0xf]
        %v746 = vld [vmem:[%s4 + $0xc] sm:$0xf]
        %v747 = vld [vmem:[%s5] sm:$0x1]
        %v749 = vperm.slane %v747, 0
        %v755 = vunpack.c.l.b16 %v743
        %v756 = vunpack.c.l.b16 %v744
        %v757 = vunpack.c.l.b16 %v745
        %v758 = vunpack.c.l.b16 %v746
        %v759 = vpack.c.b16 %v756, %v755
        %v760 = vpack.c.b16 %v758, %v757
        %v764 = vsel %vm696, %v738, 0
        %766 = vmatpush.bf16.msra.mxu0 0
        %767 = vmatpush.bf16.msra.mxu0 0
        %768 = vmatpush.bf16.msra.mxu0 0
        %769 = vmatpush.bf16.msra.mxu0 0
        %770 = vmatpush.bf16.msra.mxu0 0
        %771 = vmatpush.bf16.msra.mxu0 0
        %772 = vmatpush.bf16.msra.mxu0 %v760
        %773 = vmatpush.bf16.msra.mxu0 %v759
        %774 = vmatmul.bf16.gmra.mxu0 %v764
        %v775 = vpop.f32.mrf.mxu0
        %v776 = vadd.f32 %v749, %v775
        %v777 = vpop.f32.mrf.mxu0
        %778 = vdwg.mxu0
        %v779 = vpack.c.bf16 %v776, %v776
        %v780 = vld [vmem:[%s6] sm:$0xf]
        %v781 = vld [vmem:[%s6 + $0x4] sm:$0xf]
        %v782 = vld [vmem:[%s6 + $0x8] sm:$0xf]
        %v783 = vld [vmem:[%s6 + $0xc] sm:$0xf]
        %v784 = vld [vmem:[%s7] sm:$0x1]
        %v786 = vperm.slane %v784, 0
        %v792 = vunpack.c.l.b16 %v780
        %v793 = vunpack.c.l.b16 %v781
        %v794 = vunpack.c.l.b16 %v782
        %v795 = vunpack.c.l.b16 %v783
        %v796 = vpack.c.b16 %v793, %v792
        %v797 = vpack.c.b16 %v795, %v794
        %800 = vmatpush.bf16.msra.mxu0 0
        %801 = vmatpush.bf16.msra.mxu0 0
        %802 = vmatpush.bf16.msra.mxu0 0
        %803 = vmatpush.bf16.msra.mxu0 0
        %804 = vmatpush.bf16.msra.mxu0 0
        %805 = vmatpush.bf16.msra.mxu0 0
        %806 = vmatpush.bf16.msra.mxu0 %v797
        %807 = vmatpush.bf16.msra.mxu0 %v796
        %808 = vmatmul.bf16.gmra.mxu0 %v764
        %v809 = vpop.f32.mrf.mxu0
        %v810 = vadd.f32 %v786, %v809
        %v811 = vpop.f32.mrf.mxu0
        %812 = vdwg.mxu0
        %v813 = vpack.c.bf16 %v810, %v810
        %v814 = vld [vmem:[%s8] sm:$0xf]
        %v815 = vld [vmem:[%s8 + $0x4] sm:$0xf]
        %v816 = vld [vmem:[%s8 + $0x8] sm:$0xf]
        %v817 = vld [vmem:[%s8 + $0xc] sm:$0xf]
        %v818 = vld [vmem:[%s9] sm:$0x1]
        %v820 = vperm.slane %v818, 0
        %v826 = vunpack.c.l.b16 %v814
        %v827 = vunpack.c.l.b16 %v815
        %v828 = vunpack.c.l.b16 %v816
        %v829 = vunpack.c.l.b16 %v817
        %v830 = vpack.c.b16 %v827, %v826
        %v831 = vpack.c.b16 %v829, %v828
        %834 = vmatpush.bf16.msra.mxu0 0
        %835 = vmatpush.bf16.msra.mxu0 0
        %836 = vmatpush.bf16.msra.mxu0 0
        %837 = vmatpush.bf16.msra.mxu0 0
        %838 = vmatpush.bf16.msra.mxu0 0
        %839 = vmatpush.bf16.msra.mxu0 0
        %840 = vmatpush.bf16.msra.mxu0 %v831
        %841 = vmatpush.bf16.msra.mxu0 %v830
        %842 = vmatmul.bf16.gmra.mxu0 %v764
        %v843 = vpop.f32.mrf.mxu0
        %v844 = vadd.f32 %v820, %v843
        %v845 = vpop.f32.mrf.mxu0
        %846 = vdwg.mxu0
        %v847 = vpack.c.bf16 %v844, %v844
        %vm848 = vcmask 130048
        %v850 = vsel %vm848, %v779, 0
        %v853 = vsel %vm848, %v813, 0
        %855 = vmatpush.bf16.xpose.msra.mxu0 0
        %856 = vmatpush.bf16.xpose.msra.mxu0 0
        %857 = vmatpush.bf16.xpose.msra.mxu0 0
        %858 = vmatpush.bf16.xpose.msra.mxu0 0
        %859 = vmatpush.bf16.xpose.msra.mxu0 0
        %860 = vmatpush.bf16.xpose.msra.mxu0 0
        %861 = vmatpush.bf16.xpose.msra.mxu0 0
        %862 = vmatpush.bf16.xpose.msra.mxu0 %v853
        %863 = vmatmul.bf16.gmra.mxu0 %v850
        %v864 = vpop.f32.mrf.mxu0
        %v865 = vadd.f32 %v736, %v864
        %v866 = vpop.f32.mrf.mxu0
        %867 = vdwg.mxu0
        %vm868 = vcmask 64512
        %v869 = vsel %vm868, %v865, -inf
        %870 = vmax.xlane.f32.xlu0 %v869
        %v871 = vpop.xlane.xlu0 %870
        %v872 = vsub.f32 %v865, %v871
        %v873 = vmul.f32 %v872, 1.442695
        %v874 = vpow.pop %v873
        %v875 = vsel %vm868, %v874, 0.0
        %876 = vadd.xlane.f32.xlu0 %v875
        %v877 = vpop.xlane.xlu0 %876
        %v878 = vrcp.pop %v877
        %v879 = vmul.f32 %v874, %v878
        %v880 = vpack.c.bf16 %v879, %v879
        %v882 = vsel %vm868, %v880, 0
        %vm884 = vcmask 1043456
        %v886 = vsel %vm884, %v847, 0
        %888 = vmatpush.bf16.msra.mxu0 0
        %889 = vmatpush.bf16.msra.mxu0 0
        %890 = vmatpush.bf16.msra.mxu0 0
        %891 = vmatpush.bf16.msra.mxu0 0
        %892 = vmatpush.bf16.msra.mxu0 0
        %893 = vmatpush.bf16.msra.mxu0 0
        %894 = vmatpush.bf16.msra.mxu0 0
        %895 = vmatpush.bf16.msra.mxu0 %v886
        %896 = vmatmul.bf16.gmra.mxu0 %v882
        %v897 = vpop.f32.mrf.mxu0
        %v898 = vadd.f32 0.0, %v897
        %v899 = vpop.f32.mrf.mxu0
        %900 = vdwg.mxu0
        %v901 = vpack.c.bf16 %v898, %v898
        %v902 = vld [vmem:[%s10] sm:$0xf]
        %v903 = vld [vmem:[%s10 + $0x4] sm:$0xf]
        %v906 = vunpack.c.l.b16 %v902
        %v907 = vunpack.c.l.b16 %v903
        %v908 = vpack.c.b16 %v907, %v906
        %v911 = vsel %vm848, %v901, 0
        %913 = vmatpush.bf16.msra.mxu0 0
        %914 = vmatpush.bf16.msra.mxu0 0
        %915 = vmatpush.bf16.msra.mxu0 0
        %916 = vmatpush.bf16.msra.mxu0 0
        %917 = vmatpush.bf16.msra.mxu0 0
        %918 = vmatpush.bf16.msra.mxu0 0
        %919 = vmatpush.bf16.msra.mxu0 0
        %920 = vmatpush.bf16.msra.mxu0 %v908
        %921 = vmatmul.bf16.gmra.mxu0 %v911
        %v922 = vpop.f32.mrf.mxu0
        %v923 = vadd.f32 0.0, %v922
        %v924 = vpop.f32.mrf.mxu0
        %925 = vdwg.mxu0
        %v926 = vadd.f32 %v741, %v923
        %s927 = scalar_lea.vmem %s4, 16
        %v928 = vld [vmem:[%s927] sm:$0xf]
        %v929 = vld [vmem:[%s927 + $0x4] sm:$0xf]
        %v930 = vld [vmem:[%s927 + $0x8] sm:$0xf]
        %v931 = vld [vmem:[%s927 + $0xc] sm:$0xf]
        %s932 = scalar_lea.vmem %s5, 1
        %v933 = vld [vmem:[%s932] sm:$0x1]
        %v935 = vperm.slane %v933, 0
        %v941 = vunpack.c.l.b16 %v928
        %v942 = vunpack.c.l.b16 %v929
        %v943 = vunpack.c.l.b16 %v930
        %v944 = vunpack.c.l.b16 %v931
        %v945 = vpack.c.b16 %v942, %v941
        %v946 = vpack.c.b16 %v944, %v943
        %949 = vmatpush.bf16.msra.mxu0 0
        %950 = vmatpush.bf16.msra.mxu0 0
        %951 = vmatpush.bf16.msra.mxu0 0
        %952 = vmatpush.bf16.msra.mxu0 0
        %953 = vmatpush.bf16.msra.mxu0 0
        %954 = vmatpush.bf16.msra.mxu0 0
        %955 = vmatpush.bf16.msra.mxu0 %v946
        %956 = vmatpush.bf16.msra.mxu0 %v945
        %957 = vmatmul.bf16.gmra.mxu0 %v764
        %v958 = vpop.f32.mrf.mxu0
        %v959 = vadd.f32 %v935, %v958
        %v960 = vpop.f32.mrf.mxu0
        %961 = vdwg.mxu0
        %v962 = vpack.c.bf16 %v959, %v959
        %s963 = scalar_lea.vmem %s6, 16
        %v964 = vld [vmem:[%s963] sm:$0xf]
        %v965 = vld [vmem:[%s963 + $0x4] sm:$0xf]
        %v966 = vld [vmem:[%s963 + $0x8] sm:$0xf]
        %v967 = vld [vmem:[%s963 + $0xc] sm:$0xf]
        %s968 = scalar_lea.vmem %s7, 1
        %v969 = vld [vmem:[%s968] sm:$0x1]
        %v971 = vperm.slane %v969, 0
        %v977 = vunpack.c.l.b16 %v964
        %v978 = vunpack.c.l.b16 %v965
        %v979 = vunpack.c.l.b16 %v966
        %v980 = vunpack.c.l.b16 %v967
        %v981 = vpack.c.b16 %v978, %v977
        %v982 = vpack.c.b16 %v980, %v979
        %985 = vmatpush.bf16.msra.mxu0 0
        %986 = vmatpush.bf16.msra.mxu0 0
        %987 = vmatpush.bf16.msra.mxu0 0
        %988 = vmatpush.bf16.msra.mxu0 0
        %989 = vmatpush.bf16.msra.mxu0 0
        %990 = vmatpush.bf16.msra.mxu0 0
        %991 = vmatpush.bf16.msra.mxu0 %v982
        %992 = vmatpush.bf16.msra.mxu0 %v981
        %993 = vmatmul.bf16.gmra.mxu0 %v764
        %v994 = vpop.f32.mrf.mxu0
        %v995 = vadd.f32 %v971, %v994
        %v996 = vpop.f32.mrf.mxu0
        %997 = vdwg.mxu0
        %v998 = vpack.c.bf16 %v995, %v995
        %s999 = scalar_lea.vmem %s8, 16
        %v1000 = vld [vmem:[%s999] sm:$0xf]
        %v1001 = vld [vmem:[%s999 + $0x4] sm:$0xf]
        %v1002 = vld [vmem:[%s999 + $0x8] sm:$0xf]
        %v1003 = vld [vmem:[%s999 + $0xc] sm:$0xf]
        %s1004 = scalar_lea.vmem %s9, 1
        %v1005 = vld [vmem:[%s1004] sm:$0x1]
        %v1007 = vperm.slane %v1005, 0
        %v1013 = vunpack.c.l.b16 %v1000
        %v1014 = vunpack.c.l.b16 %v1001
        %v1015 = vunpack.c.l.b16 %v1002
        %v1016 = vunpack.c.l.b16 %v1003
        %v1017 = vpack.c.b16 %v1014, %v1013
        %v1018 = vpack.c.b16 %v1016, %v1015
        %1021 = vmatpush.bf16.msra.mxu0 0
        %1022 = vmatpush.bf16.msra.mxu0 0
        %1023 = vmatpush.bf16.msra.mxu0 0
        %1024 = vmatpush.bf16.msra.mxu0 0
        %1025 = vmatpush.bf16.msra.mxu0 0
        %1026 = vmatpush.bf16.msra.mxu0 0
        %1027 = vmatpush.bf16.msra.mxu0 %v1018
        %1028 = vmatpush.bf16.msra.mxu0 %v1017
        %1029 = vmatmul.bf16.gmra.mxu0 %v764
        %v1030 = vpop.f32.mrf.mxu0
        %v1031 = vadd.f32 %v1007, %v1030
        %v1032 = vpop.f32.mrf.mxu0
        %1033 = vdwg.mxu0
        %v1034 = vpack.c.bf16 %v1031, %v1031
        %v1036 = vsel %vm848, %v962, 0
        %v1039 = vsel %vm848, %v998, 0
        %1041 = vmatpush.bf16.xpose.msra.mxu0 0
        %1042 = vmatpush.bf16.xpose.msra.mxu0 0
        %1043 = vmatpush.bf16.xpose.msra.mxu0 0
        %1044 = vmatpush.bf16.xpose.msra.mxu0 0
        %1045 = vmatpush.bf16.xpose.msra.mxu0 0
        %1046 = vmatpush.bf16.xpose.msra.mxu0 0
        %1047 = vmatpush.bf16.xpose.msra.mxu0 0
        %1048 = vmatpush.bf16.xpose.msra.mxu0 %v1039
        %1049 = vmatmul.bf16.gmra.mxu0 %v1036
        %v1050 = vpop.f32.mrf.mxu0
        %v1051 = vadd.f32 %v736, %v1050
        %v1052 = vpop.f32.mrf.mxu0
        %1053 = vdwg.mxu0
        %v1054 = vsel %vm868, %v1051, -inf
        %1055 = vmax.xlane.f32.xlu0 %v1054
        %v1056 = vpop.xlane.xlu0 %1055
        %v1057 = vsub.f32 %v1051, %v1056
        %v1058 = vmul.f32 %v1057, 1.442695
        %v1059 = vpow.pop %v1058
        %v1060 = vsel %vm868, %v1059, 0.0
        %1061 = vadd.xlane.f32.xlu0 %v1060
        %v1062 = vpop.xlane.xlu0 %1061
        %v1063 = vrcp.pop %v1062
        %v1064 = vmul.f32 %v1059, %v1063
        %v1065 = vpack.c.bf16 %v1064, %v1064
        %v1067 = vsel %vm868, %v1065, 0
        %v1070 = vsel %vm884, %v1034, 0
        %1072 = vmatpush.bf16.msra.mxu0 0
        %1073 = vmatpush.bf16.msra.mxu0 0
        %1074 = vmatpush.bf16.msra.mxu0 0
        %1075 = vmatpush.bf16.msra.mxu0 0
        %1076 = vmatpush.bf16.msra.mxu0 0
        %1077 = vmatpush.bf16.msra.mxu0 0
        %1078 = vmatpush.bf16.msra.mxu0 0
        %1079 = vmatpush.bf16.msra.mxu0 %v1070
        %1080 = vmatmul.bf16.gmra.mxu0 %v1067
        %v1081 = vpop.f32.mrf.mxu0
        %v1082 = vadd.f32 0.0, %v1081
        %v1083 = vpop.f32.mrf.mxu0
        %1084 = vdwg.mxu0
        %v1085 = vpack.c.bf16 %v1082, %v1082
        %s1086 = scalar_lea.vmem %s10, 8
        %v1087 = vld [vmem:[%s1086] sm:$0xf]
        %v1088 = vld [vmem:[%s1086 + $0x4] sm:$0xf]
        %v1091 = vunpack.c.l.b16 %v1087
        %v1092 = vunpack.c.l.b16 %v1088
        %v1093 = vpack.c.b16 %v1092, %v1091
        %v1096 = vsel %vm848, %v1085, 0
        %1098 = vmatpush.bf16.msra.mxu0 0
        %1099 = vmatpush.bf16.msra.mxu0 0
        %1100 = vmatpush.bf16.msra.mxu0 0
        %1101 = vmatpush.bf16.msra.mxu0 0
        %1102 = vmatpush.bf16.msra.mxu0 0
        %1103 = vmatpush.bf16.msra.mxu0 0
        %1104 = vmatpush.bf16.msra.mxu0 0
        %1105 = vmatpush.bf16.msra.mxu0 %v1093
        %1106 = vmatmul.bf16.gmra.mxu0 %v1096
        %v1107 = vpop.f32.mrf.mxu0
        %v1108 = vadd.f32 0.0, %v1107
        %v1109 = vpop.f32.mrf.mxu0
        %1110 = vdwg.mxu0
        %v1111 = vadd.f32 %v926, %v1108
        %v1112 = vadd.f32 %v733, %v1111
        %v1113 = vld [vmem:[%s12] sm:$0x1]
        %v1114 = vld [vmem:[%s13] sm:$0x1]
        %v1115 = vsel %vm696, %v1112, 0.0
        %1116 = vadd.xlane.f32.xlu0 %v1115
        %v1117 = vpop.xlane.xlu0 %1116
        %v1118 = vmul.f32 %v1117, %v706
        %v1119 = vsub.f32 %v1112, %v1118
        %v1120 = vmul.f32 %v1119, %v1119
        %v1121 = vsel %vm696, %v1120, 0.0
        %1122 = vadd.xlane.f32.xlu0 %v1121
        %v1123 = vpop.xlane.xlu0 %1122
        %v1124 = vmul.f32 %v1123, %v706
        %v1125 = vadd.f32 %v1124, 1e-12
        %v1126 = vrsqrt.pop %v1125
        %v1127 = vmul.f32 %v1126, %v1125
        %v1128 = vmul.f32 %v1127, %v1126
        %v1129 = vmul.f32 0.5, %v1128
        %v1130 = vsub.f32 1.5, %v1129
        %v1131 = vmul.f32 %v1126, %v1130
        %vm1132 = vweird.f32 %v1125
        %vm1133 = vweird.f32 %v1126
        %vm1134 = vmor %vm1132, %vm1133
        %v1135 = vsel %vm1134, %v1126, %v1131
        %v1136 = vmul.f32 %v1119, %v1135
        %v1138 = vperm.slane %v1113, 0
        %v1140 = vmul.f32 %v1136, %v1138
        %v1142 = vperm.slane %v1114, 0
        %v1144 = vadd.f32 %v1140, %v1142
        %v1145 = vpack.c.bf16 %v1144, %v1144
        %v1146 = vld [vmem:[%s14] sm:$0xf]
        %v1147 = vld [vmem:[%s14 + $0x4] sm:$0xf]
        %v1148 = vld [vmem:[%s14 + $0x8] sm:$0xf]
        %v1149 = vld [vmem:[%s14 + $0xc] sm:$0xf]
        %v1150 = vld [vmem:[%s15] sm:$0x1]
        %v1152 = vperm.slane %v1150, 0
        %v1158 = vunpack.c.l.b16 %v1146
        %v1159 = vunpack.c.l.b16 %v1147
        %v1160 = vunpack.c.l.b16 %v1148
        %v1161 = vunpack.c.l.b16 %v1149
        %v1162 = vpack.c.b16 %v1159, %v1158
        %v1163 = vpack.c.b16 %v1161, %v1160
        %v1167 = vsel %vm696, %v1145, 0
        %1169 = vmatpush.bf16.msra.mxu0 0
        %1170 = vmatpush.bf16.msra.mxu0 0
        %1171 = vmatpush.bf16.msra.mxu0 0
        %1172 = vmatpush.bf16.msra.mxu0 0
        %1173 = vmatpush.bf16.msra.mxu0 0
        %1174 = vmatpush.bf16.msra.mxu0 0
        %1175 = vmatpush.bf16.msra.mxu0 %v1163
        %1176 = vmatpush.bf16.msra.mxu0 %v1162
        %1177 = vmatmul.bf16.gmra.mxu0 %v1167
        %v1178 = vpop.f32.mrf.mxu0
        %v1179 = vadd.f32 %v1152, %v1178
        %v1180 = vpop.f32.mrf.mxu0
        %1181 = vdwg.mxu0
        %v1182 = vmul.f32 %v1179, %v1179
        %v1183 = vmul.f32 %v1179, %v1182
        %v1184 = vmul.f32 %v1183, 0.044715
        %v1185 = vadd.f32 %v1179, %v1184
        %v1186 = vmul.f32 %v1185, 0.7978846
        %v1187 = vtanh.pop %v1186
        %v1188 = vadd.f32 %v1187, 1.0
        %v1189 = vmul.f32 %v1188, 0.5
        %v1190 = vmul.f32 %v1179, %v1189
        %v1191 = vpack.c.bf16 %v1190, %v1190
        %v1192 = vld [vmem:[%s16] sm:$0xf]
        %v1193 = vld [vmem:[%s16 + $0x4] sm:$0xf]
        %v1194 = vld [vmem:[%s16 + $0x8] sm:$0xf]
        %v1195 = vld [vmem:[%s16 + $0xc] sm:$0xf]
        %v1196 = vld [vmem:[%s16 + $0x10] sm:$0xf]
        %v1197 = vld [vmem:[%s16 + $0x14] sm:$0xf]
        %v1198 = vld [vmem:[%s16 + $0x18] sm:$0xf]
        %v1199 = vld [vmem:[%s16 + $0x1c] sm:$0xf]
        %v1200 = vld [vmem:[%s17] sm:$0x1]
        %v1202 = vperm.slane %v1200, 0
        %v1212 = vunpack.c.l.b16 %v1192
        %v1213 = vunpack.c.l.b16 %v1193
        %v1214 = vunpack.c.l.b16 %v1194
        %v1215 = vunpack.c.l.b16 %v1195
        %v1216 = vunpack.c.l.b16 %v1196
        %v1217 = vunpack.c.l.b16 %v1197
        %v1218 = vunpack.c.l.b16 %v1198
        %v1219 = vunpack.c.l.b16 %v1199
        %v1220 = vpack.c.b16 %v1213, %v1212
        %v1221 = vpack.c.b16 %v1215, %v1214
        %v1222 = vpack.c.b16 %v1217, %v1216
        %v1223 = vpack.c.b16 %v1219, %v1218
        %vm1228 = vcmask 523264
        %v1230 = vsel %vm1228, %v1191, 0
        %1232 = vmatpush.bf16.msra.mxu0 0
        %1233 = vmatpush.bf16.msra.mxu0 0
        %1234 = vmatpush.bf16.msra.mxu0 0
        %1235 = vmatpush.bf16.msra.mxu0 0
        %1236 = vmatpush.bf16.msra.mxu0 %v1223
        %1237 = vmatpush.bf16.msra.mxu0 %v1222
        %1238 = vmatpush.bf16.msra.mxu0 %v1221
        %1239 = vmatpush.bf16.msra.mxu0 %v1220
        %1240 = vmatmul.bf16.gmra.mxu0 %v1230
        %v1241 = vpop.f32.mrf.mxu0
        %v1242 = vadd.f32 %v1202, %v1241
        %v1243 = vpop.f32.mrf.mxu0
        %1244 = vdwg.mxu0
        %v1245 = vadd.f32 %v1144, %v1242
        %v1246 = vld [vmem:[%s18] sm:$0x1]
        %v1247 = vld [vmem:[%s19] sm:$0x1]
        %v1248 = vsel %vm696, %v1245, 0.0
        %1249 = vadd.xlane.f32.xlu0 %v1248
        %v1250 = vpop.xlane.xlu0 %1249
        %v1251 = vmul.f32 %v1250, %v706
        %v1252 = vsub.f32 %v1245, %v1251
        %v1253 = vmul.f32 %v1252, %v1252
        %v1254 = vsel %vm696, %v1253, 0.0
        %1255 = vadd.xlane.f32.xlu0 %v1254
        %v1256 = vpop.xlane.xlu0 %1255
        %v1257 = vmul.f32 %v1256, %v706
        %v1258 = vadd.f32 %v1257, 1e-12
        %v1259 = vrsqrt.pop %v1258
        %v1260 = vmul.f32 %v1259, %v1258
        %v1261 = vmul.f32 %v1260, %v1259
        %v1262 = vmul.f32 0.5, %v1261
        %v1263 = vsub.f32 1.5, %v1262
        %v1264 = vmul.f32 %v1259, %v1263
        %vm1265 = vweird.f32 %v1258
        %vm1266 = vweird.f32 %v1259
        %vm1267 = vmor %vm1265, %vm1266
        %v1268 = vsel %vm1267, %v1259, %v1264
        %v1269 = vmul.f32 %v1252, %v1268
        %v1271 = vperm.slane %v1246, 0
        %v1273 = vmul.f32 %v1269, %v1271
        %v1275 = vperm.slane %v1247, 0
        %v1277 = vadd.f32 %v1273, %v1275
        %v1278 = vpack.c.bf16 %v1277, %v1277
        %s1279 = scalar_lea.vmem %s11, 1
        %v1280 = vld [vmem:[%s1279] sm:$0x1]
        %v1282 = vperm.slane %v1280, 0
        %s1284 = scalar_lea.vmem %s4, 32
        %v1285 = vld [vmem:[%s1284] sm:$0xf]
        %v1286 = vld [vmem:[%s1284 + $0x4] sm:$0xf]
        %v1287 = vld [vmem:[%s1284 + $0x8] sm:$0xf]
        %v1288 = vld [vmem:[%s1284 + $0xc] sm:$0xf]
        %s1289 = scalar_lea.vmem %s5, 2
        %v1290 = vld [vmem:[%s1289] sm:$0x1]
        %v1292 = vperm.slane %v1290, 0
        %v1298 = vunpack.c.l.b16 %v1285
        %v1299 = vunpack.c.l.b16 %v1286
        %v1300 = vunpack.c.l.b16 %v1287
        %v1301 = vunpack.c.l.b16 %v1288
        %v1302 = vpack.c.b16 %v1299, %v1298
        %v1303 = vpack.c.b16 %v1301, %v1300
        %v1307 = vsel %vm696, %v1278, 0
        %1309 = vmatpush.bf16.msra.mxu0 0
        %1310 = vmatpush.bf16.msra.mxu0 0
        %1311 = vmatpush.bf16.msra.mxu0 0
        %1312 = vmatpush.bf16.msra.mxu0 0
        %1313 = vmatpush.bf16.msra.mxu0 0
        %1314 = vmatpush.bf16.msra.mxu0 0
        %1315 = vmatpush.bf16.msra.mxu0 %v1303
        %1316 = vmatpush.bf16.msra.mxu0 %v1302
        %1317 = vmatmul.bf16.gmra.mxu0 %v1307
        %v1318 = vpop.f32.mrf.mxu0
        %v1319 = vadd.f32 %v1292, %v1318
        %v1320 = vpop.f32.mrf.mxu0
        %1321 = vdwg.mxu0
        %v1322 = vpack.c.bf16 %v1319, %v1319
        %s1323 = scalar_lea.vmem %s6, 32
        %v1324 = vld [vmem:[%s1323] sm:$0xf]
        %v1325 = vld [vmem:[%s1323 + $0x4] sm:$0xf]
        %v1326 = vld [vmem:[%s1323 + $0x8] sm:$0xf]
        %v1327 = vld [vmem:[%s1323 + $0xc] sm:$0xf]
        %s1328 = scalar_lea.vmem %s7, 2
        %v1329 = vld [vmem:[%s1328] sm:$0x1]
        %v1331 = vperm.slane %v1329, 0
        %v1337 = vunpack.c.l.b16 %v1324
        %v1338 = vunpack.c.l.b16 %v1325
        %v1339 = vunpack.c.l.b16 %v1326
        %v1340 = vunpack.c.l.b16 %v1327
        %v1341 = vpack.c.b16 %v1338, %v1337
        %v1342 = vpack.c.b16 %v1340, %v1339
        %1345 = vmatpush.bf16.msra.mxu0 0
        %1346 = vmatpush.bf16.msra.mxu0 0
        %1347 = vmatpush.bf16.msra.mxu0 0
        %1348 = vmatpush.bf16.msra.mxu0 0
        %1349 = vmatpush.bf16.msra.mxu0 0
        %1350 = vmatpush.bf16.msra.mxu0 0
        %1351 = vmatpush.bf16.msra.mxu0 %v1342
        %1352 = vmatpush.bf16.msra.mxu0 %v1341
        %1353 = vmatmul.bf16.gmra.mxu0 %v1307
        %v1354 = vpop.f32.mrf.mxu0
        %v1355 = vadd.f32 %v1331, %v1354
        %v1356 = vpop.f32.mrf.mxu0
        %1357 = vdwg.mxu0
        %v1358 = vpack.c.bf16 %v1355, %v1355
        %s1359 = scalar_lea.vmem %s8, 32
        %v1360 = vld [vmem:[%s1359] sm:$0xf]
        %v1361 = vld [vmem:[%s1359 + $0x4] sm:$0xf]
        %v1362 = vld [vmem:[%s1359 + $0x8] sm:$0xf]
        %v1363 = vld [vmem:[%s1359 + $0xc] sm:$0xf]
        %s1364 = scalar_lea.vmem %s9, 2
        %v1365 = vld [vmem:[%s1364] sm:$0x1]
        %v1367 = vperm.slane %v1365, 0
        %v1373 = vunpack.c.l.b16 %v1360
        %v1374 = vunpack.c.l.b16 %v1361
        %v1375 = vunpack.c.l.b16 %v1362
        %v1376 = vunpack.c.l.b16 %v1363
        %v1377 = vpack.c.b16 %v1374, %v1373
        %v1378 = vpack.c.b16 %v1376, %v1375
        %1381 = vmatpush.bf16.msra.mxu0 0
        %1382 = vmatpush.bf16.msra.mxu0 0
        %1383 = vmatpush.bf16.msra.mxu0 0
        %1384 = vmatpush.bf16.msra.mxu0 0
        %1385 = vmatpush.bf16.msra.mxu0 0
        %1386 = vmatpush.bf16.msra.mxu0 0
        %1387 = vmatpush.bf16.msra.mxu0 %v1378
        %1388 = vmatpush.bf16.msra.mxu0 %v1377
        %1389 = vmatmul.bf16.gmra.mxu0 %v1307
        %v1390 = vpop.f32.mrf.mxu0
        %v1391 = vadd.f32 %v1367, %v1390
        %v1392 = vpop.f32.mrf.mxu0
        %1393 = vdwg.mxu0
        %v1394 = vpack.c.bf16 %v1391, %v1391
        %v1396 = vsel %vm848, %v1322, 0
        %v1399 = vsel %vm848, %v1358, 0
        %1401 = vmatpush.bf16.xpose.msra.mxu0 0
        %1402 = vmatpush.bf16.xpose.msra.mxu0 0
        %1403 = vmatpush.bf16.xpose.msra.mxu0 0
        %1404 = vmatpush.bf16.xpose.msra.mxu0 0
        %1405 = vmatpush.bf16.xpose.msra.mxu0 0
        %1406 = vmatpush.bf16.xpose.msra.mxu0 0
        %1407 = vmatpush.bf16.xpose.msra.mxu0 0
        %1408 = vmatpush.bf16.xpose.msra.mxu0 %v1399
        %1409 = vmatmul.bf16.gmra.mxu0 %v1396
        %v1410 = vpop.f32.mrf.mxu0
        %v1411 = vadd.f32 %v736, %v1410
        %v1412 = vpop.f32.mrf.mxu0
        %1413 = vdwg.mxu0
        %v1414 = vsel %vm868, %v1411, -inf
        %1415 = vmax.xlane.f32.xlu0 %v1414
        %v1416 = vpop.xlane.xlu0 %1415
        %v1417 = vsub.f32 %v1411, %v1416
        %v1418 = vmul.f32 %v1417, 1.442695
        %v1419 = vpow.pop %v1418
        %v1420 = vsel %vm868, %v1419, 0.0
        %1421 = vadd.xlane.f32.xlu0 %v1420
        %v1422 = vpop.xlane.xlu0 %1421
        %v1423 = vrcp.pop %v1422
        %v1424 = vmul.f32 %v1419, %v1423
        %v1425 = vpack.c.bf16 %v1424, %v1424
        %v1427 = vsel %vm868, %v1425, 0
        %v1430 = vsel %vm884, %v1394, 0
        %1432 = vmatpush.bf16.msra.mxu0 0
        %1433 = vmatpush.bf16.msra.mxu0 0
        %1434 = vmatpush.bf16.msra.mxu0 0
        %1435 = vmatpush.bf16.msra.mxu0 0
        %1436 = vmatpush.bf16.msra.mxu0 0
        %1437 = vmatpush.bf16.msra.mxu0 0
        %1438 = vmatpush.bf16.msra.mxu0 0
        %1439 = vmatpush.bf16.msra.mxu0 %v1430
        %1440 = vmatmul.bf16.gmra.mxu0 %v1427
        %v1441 = vpop.f32.mrf.mxu0
        %v1442 = vadd.f32 0.0, %v1441
        %v1443 = vpop.f32.mrf.mxu0
        %1444 = vdwg.mxu0
        %v1445 = vpack.c.bf16 %v1442, %v1442
        %s1446 = scalar_lea.vmem %s10, 16
        %v1447 = vld [vmem:[%s1446] sm:$0xf]
        %v1448 = vld [vmem:[%s1446 + $0x4] sm:$0xf]
        %v1451 = vunpack.c.l.b16 %v1447
        %v1452 = vunpack.c.l.b16 %v1448
        %v1453 = vpack.c.b16 %v1452, %v1451
        %v1456 = vsel %vm848, %v1445, 0
        %1458 = vmatpush.bf16.msra.mxu0 0
        %1459 = vmatpush.bf16.msra.mxu0 0
        %1460 = vmatpush.bf16.msra.mxu0 0
        %1461 = vmatpush.bf16.msra.mxu0 0
        %1462 = vmatpush.bf16.msra.mxu0 0
        %1463 = vmatpush.bf16.msra.mxu0 0
        %1464 = vmatpush.bf16.msra.mxu0 0
        %1465 = vmatpush.bf16.msra.mxu0 %v1453
        %1466 = vmatmul.bf16.gmra.mxu0 %v1456
        %v1467 = vpop.f32.mrf.mxu0
        %v1468 = vadd.f32 0.0, %v1467
        %v1469 = vpop.f32.mrf.mxu0
        %1470 = vdwg.mxu0
        %v1471 = vadd.f32 %v1282, %v1468
        %s1472 = scalar_lea.vmem %s4, 48
        %v1473 = vld [vmem:[%s1472] sm:$0xf]
        %v1474 = vld [vmem:[%s1472 + $0x4] sm:$0xf]
        %v1475 = vld [vmem:[%s1472 + $0x8] sm:$0xf]
        %v1476 = vld [vmem:[%s1472 + $0xc] sm:$0xf]
        %s1477 = scalar_lea.vmem %s5, 3
        %v1478 = vld [vmem:[%s1477] sm:$0x1]
        %v1480 = vperm.slane %v1478, 0
        %v1486 = vunpack.c.l.b16 %v1473
        %v1487 = vunpack.c.l.b16 %v1474
        %v1488 = vunpack.c.l.b16 %v1475
        %v1489 = vunpack.c.l.b16 %v1476
        %v1490 = vpack.c.b16 %v1487, %v1486
        %v1491 = vpack.c.b16 %v1489, %v1488
        %1494 = vmatpush.bf16.msra.mxu0 0
        %1495 = vmatpush.bf16.msra.mxu0 0
        %1496 = vmatpush.bf16.msra.mxu0 0
        %1497 = vmatpush.bf16.msra.mxu0 0
        %1498 = vmatpush.bf16.msra.mxu0 0
        %1499 = vmatpush.bf16.msra.mxu0 0
        %1500 = vmatpush.bf16.msra.mxu0 %v1491
        %1501 = vmatpush.bf16.msra.mxu0 %v1490
        %1502 = vmatmul.bf16.gmra.mxu0 %v1307
        %v1503 = vpop.f32.mrf.mxu0
        %v1504 = vadd.f32 %v1480, %v1503
        %v1505 = vpop.f32.mrf.mxu0
        %1506 = vdwg.mxu0
        %v1507 = vpack.c.bf16 %v1504, %v1504
        %s1508 = scalar_lea.vmem %s6, 48
        %v1509 = vld [vmem:[%s1508] sm:$0xf]
        %v1510 = vld [vmem:[%s1508 + $0x4] sm:$0xf]
        %v1511 = vld [vmem:[%s1508 + $0x8] sm:$0xf]
        %v1512 = vld [vmem:[%s1508 + $0xc] sm:$0xf]
        %s1513 = scalar_lea.vmem %s7, 3
        %v1514 = vld [vmem:[%s1513] sm:$0x1]
        %v1516 = vperm.slane %v1514, 0
        %v1522 = vunpack.c.l.b16 %v1509
        %v1523 = vunpack.c.l.b16 %v1510
        %v1524 = vunpack.c.l.b16 %v1511
        %v1525 = vunpack.c.l.b16 %v1512
        %v1526 = vpack.c.b16 %v1523, %v1522
        %v1527 = vpack.c.b16 %v1525, %v1524
        %1530 = vmatpush.bf16.msra.mxu0 0
        %1531 = vmatpush.bf16.msra.mxu0 0
        %1532 = vmatpush.bf16.msra.mxu0 0
        %1533 = vmatpush.bf16.msra.mxu0 0
        %1534 = vmatpush.bf16.msra.mxu0 0
        %1535 = vmatpush.bf16.msra.mxu0 0
        %1536 = vmatpush.bf16.msra.mxu0 %v1527
        %1537 = vmatpush.bf16.msra.mxu0 %v1526
        %1538 = vmatmul.bf16.gmra.mxu0 %v1307
        %v1539 = vpop.f32.mrf.mxu0
        %v1540 = vadd.f32 %v1516, %v1539
        %v1541 = vpop.f32.mrf.mxu0
        %1542 = vdwg.mxu0
        %v1543 = vpack.c.bf16 %v1540, %v1540
        %s1544 = scalar_lea.vmem %s8, 48
        %v1545 = vld [vmem:[%s1544] sm:$0xf]
        %v1546 = vld [vmem:[%s1544 + $0x4] sm:$0xf]
        %v1547 = vld [vmem:[%s1544 + $0x8] sm:$0xf]
        %v1548 = vld [vmem:[%s1544 + $0xc] sm:$0xf]
        %s1549 = scalar_lea.vmem %s9, 3
        %v1550 = vld [vmem:[%s1549] sm:$0x1]
        %v1552 = vperm.slane %v1550, 0
        %v1558 = vunpack.c.l.b16 %v1545
        %v1559 = vunpack.c.l.b16 %v1546
        %v1560 = vunpack.c.l.b16 %v1547
        %v1561 = vunpack.c.l.b16 %v1548
        %v1562 = vpack.c.b16 %v1559, %v1558
        %v1563 = vpack.c.b16 %v1561, %v1560
        %1566 = vmatpush.bf16.msra.mxu0 0
        %1567 = vmatpush.bf16.msra.mxu0 0
        %1568 = vmatpush.bf16.msra.mxu0 0
        %1569 = vmatpush.bf16.msra.mxu0 0
        %1570 = vmatpush.bf16.msra.mxu0 0
        %1571 = vmatpush.bf16.msra.mxu0 0
        %1572 = vmatpush.bf16.msra.mxu0 %v1563
        %1573 = vmatpush.bf16.msra.mxu0 %v1562
        %1574 = vmatmul.bf16.gmra.mxu0 %v1307
        %v1575 = vpop.f32.mrf.mxu0
        %v1576 = vadd.f32 %v1552, %v1575
        %v1577 = vpop.f32.mrf.mxu0
        %1578 = vdwg.mxu0
        %v1579 = vpack.c.bf16 %v1576, %v1576
        %v1581 = vsel %vm848, %v1507, 0
        %v1584 = vsel %vm848, %v1543, 0
        %1586 = vmatpush.bf16.xpose.msra.mxu0 0
        %1587 = vmatpush.bf16.xpose.msra.mxu0 0
        %1588 = vmatpush.bf16.xpose.msra.mxu0 0
        %1589 = vmatpush.bf16.xpose.msra.mxu0 0
        %1590 = vmatpush.bf16.xpose.msra.mxu0 0
        %1591 = vmatpush.bf16.xpose.msra.mxu0 0
        %1592 = vmatpush.bf16.xpose.msra.mxu0 0
        %1593 = vmatpush.bf16.xpose.msra.mxu0 %v1584
        %1594 = vmatmul.bf16.gmra.mxu0 %v1581
        %v1595 = vpop.f32.mrf.mxu0
        %v1596 = vadd.f32 %v736, %v1595
        %v1597 = vpop.f32.mrf.mxu0
        %1598 = vdwg.mxu0
        %v1599 = vsel %vm868, %v1596, -inf
        %1600 = vmax.xlane.f32.xlu0 %v1599
        %v1601 = vpop.xlane.xlu0 %1600
        %v1602 = vsub.f32 %v1596, %v1601
        %v1603 = vmul.f32 %v1602, 1.442695
        %v1604 = vpow.pop %v1603
        %v1605 = vsel %vm868, %v1604, 0.0
        %1606 = vadd.xlane.f32.xlu0 %v1605
        %v1607 = vpop.xlane.xlu0 %1606
        %v1608 = vrcp.pop %v1607
        %v1609 = vmul.f32 %v1604, %v1608
        %v1610 = vpack.c.bf16 %v1609, %v1609
        %v1612 = vsel %vm868, %v1610, 0
        %v1615 = vsel %vm884, %v1579, 0
        %1617 = vmatpush.bf16.msra.mxu0 0
        %1618 = vmatpush.bf16.msra.mxu0 0
        %1619 = vmatpush.bf16.msra.mxu0 0
        %1620 = vmatpush.bf16.msra.mxu0 0
        %1621 = vmatpush.bf16.msra.mxu0 0
        %1622 = vmatpush.bf16.msra.mxu0 0
        %1623 = vmatpush.bf16.msra.mxu0 0
        %1624 = vmatpush.bf16.msra.mxu0 %v1615
        %1625 = vmatmul.bf16.gmra.mxu0 %v1612
        %v1626 = vpop.f32.mrf.mxu0
        %v1627 = vadd.f32 0.0, %v1626
        %v1628 = vpop.f32.mrf.mxu0
        %1629 = vdwg.mxu0
        %v1630 = vpack.c.bf16 %v1627, %v1627
        %s1631 = scalar_lea.vmem %s10, 24
        %v1632 = vld [vmem:[%s1631] sm:$0xf]
        %v1633 = vld [vmem:[%s1631 + $0x4] sm:$0xf]
        %v1636 = vunpack.c.l.b16 %v1632
        %v1637 = vunpack.c.l.b16 %v1633
        %v1638 = vpack.c.b16 %v1637, %v1636
        %v1641 = vsel %vm848, %v1630, 0
        %1643 = vmatpush.bf16.msra.mxu0 0
        %1644 = vmatpush.bf16.msra.mxu0 0
        %1645 = vmatpush.bf16.msra.mxu0 0
        %1646 = vmatpush.bf16.msra.mxu0 0
        %1647 = vmatpush.bf16.msra.mxu0 0
        %1648 = vmatpush.bf16.msra.mxu0 0
        %1649 = vmatpush.bf16.msra.mxu0 0
        %1650 = vmatpush.bf16.msra.mxu0 %v1638
        %1651 = vmatmul.bf16.gmra.mxu0 %v1641
        %v1652 = vpop.f32.mrf.mxu0
        %v1653 = vadd.f32 0.0, %v1652
        %v1654 = vpop.f32.mrf.mxu0
        %1655 = vdwg.mxu0
        %v1656 = vadd.f32 %v1471, %v1653
        %v1657 = vadd.f32 %v1277, %v1656
        %s1658 = scalar_lea.vmem %s12, 1
        %v1659 = vld [vmem:[%s1658] sm:$0x1]
        %s1660 = scalar_lea.vmem %s13, 1
        %v1661 = vld [vmem:[%s1660] sm:$0x1]
        %v1662 = vsel %vm696, %v1657, 0.0
        %1663 = vadd.xlane.f32.xlu0 %v1662
        %v1664 = vpop.xlane.xlu0 %1663
        %v1665 = vmul.f32 %v1664, %v706
        %v1666 = vsub.f32 %v1657, %v1665
        %v1667 = vmul.f32 %v1666, %v1666
        %v1668 = vsel %vm696, %v1667, 0.0
        %1669 = vadd.xlane.f32.xlu0 %v1668
        %v1670 = vpop.xlane.xlu0 %1669
        %v1671 = vmul.f32 %v1670, %v706
        %v1672 = vadd.f32 %v1671, 1e-12
        %v1673 = vrsqrt.pop %v1672
        %v1674 = vmul.f32 %v1673, %v1672
        %v1675 = vmul.f32 %v1674, %v1673
        %v1676 = vmul.f32 0.5, %v1675
        %v1677 = vsub.f32 1.5, %v1676
        %v1678 = vmul.f32 %v1673, %v1677
        %vm1679 = vweird.f32 %v1672
        %vm1680 = vweird.f32 %v1673
        %vm1681 = vmor %vm1679, %vm1680
        %v1682 = vsel %vm1681, %v1673, %v1678
        %v1683 = vmul.f32 %v1666, %v1682
        %v1685 = vperm.slane %v1659, 0
        %v1687 = vmul.f32 %v1683, %v1685
        %v1689 = vperm.slane %v1661, 0
        %v1691 = vadd.f32 %v1687, %v1689
        %v1692 = vpack.c.bf16 %v1691, %v1691
        %s1693 = scalar_lea.vmem %s14, 16
        %v1694 = vld [vmem:[%s1693] sm:$0xf]
        %v1695 = vld [vmem:[%s1693 + $0x4] sm:$0xf]
        %v1696 = vld [vmem:[%s1693 + $0x8] sm:$0xf]
        %v1697 = vld [vmem:[%s1693 + $0xc] sm:$0xf]
        %s1698 = scalar_lea.vmem %s15, 1
        %v1699 = vld [vmem:[%s1698] sm:$0x1]
        %v1701 = vperm.slane %v1699, 0
        %v1707 = vunpack.c.l.b16 %v1694
        %v1708 = vunpack.c.l.b16 %v1695
        %v1709 = vunpack.c.l.b16 %v1696
        %v1710 = vunpack.c.l.b16 %v1697
        %v1711 = vpack.c.b16 %v1708, %v1707
        %v1712 = vpack.c.b16 %v1710, %v1709
        %v1716 = vsel %vm696, %v1692, 0
        %1718 = vmatpush.bf16.msra.mxu0 0
        %1719 = vmatpush.bf16.msra.mxu0 0
        %1720 = vmatpush.bf16.msra.mxu0 0
        %1721 = vmatpush.bf16.msra.mxu0 0
        %1722 = vmatpush.bf16.msra.mxu0 0
        %1723 = vmatpush.bf16.msra.mxu0 0
        %1724 = vmatpush.bf16.msra.mxu0 %v1712
        %1725 = vmatpush.bf16.msra.mxu0 %v1711
        %1726 = vmatmul.bf16.gmra.mxu0 %v1716
        %v1727 = vpop.f32.mrf.mxu0
        %v1728 = vadd.f32 %v1701, %v1727
        %v1729 = vpop.f32.mrf.mxu0
        %1730 = vdwg.mxu0
        %v1731 = vmul.f32 %v1728, %v1728
        %v1732 = vmul.f32 %v1728, %v1731
        %v1733 = vmul.f32 %v1732, 0.044715
        %v1734 = vadd.f32 %v1728, %v1733
        %v1735 = vmul.f32 %v1734, 0.7978846
        %v1736 = vtanh.pop %v1735
        %v1737 = vadd.f32 %v1736, 1.0
        %v1738 = vmul.f32 %v1737, 0.5
        %v1739 = vmul.f32 %v1728, %v1738
        %v1740 = vpack.c.bf16 %v1739, %v1739
        %s1741 = scalar_lea.vmem %s16, 32
        %v1742 = vld [vmem:[%s1741] sm:$0xf]
        %v1743 = vld [vmem:[%s1741 + $0x4] sm:$0xf]
        %v1744 = vld [vmem:[%s1741 + $0x8] sm:$0xf]
        %v1745 = vld [vmem:[%s1741 + $0xc] sm:$0xf]
        %v1746 = vld [vmem:[%s1741 + $0x10] sm:$0xf]
        %v1747 = vld [vmem:[%s1741 + $0x14] sm:$0xf]
        %v1748 = vld [vmem:[%s1741 + $0x18] sm:$0xf]
        %v1749 = vld [vmem:[%s1741 + $0x1c] sm:$0xf]
        %s1750 = scalar_lea.vmem %s17, 1
        %v1751 = vld [vmem:[%s1750] sm:$0x1]
        %v1753 = vperm.slane %v1751, 0
        %v1763 = vunpack.c.l.b16 %v1742
        %v1764 = vunpack.c.l.b16 %v1743
        %v1765 = vunpack.c.l.b16 %v1744
        %v1766 = vunpack.c.l.b16 %v1745
        %v1767 = vunpack.c.l.b16 %v1746
        %v1768 = vunpack.c.l.b16 %v1747
        %v1769 = vunpack.c.l.b16 %v1748
        %v1770 = vunpack.c.l.b16 %v1749
        %v1771 = vpack.c.b16 %v1764, %v1763
        %v1772 = vpack.c.b16 %v1766, %v1765
        %v1773 = vpack.c.b16 %v1768, %v1767
        %v1774 = vpack.c.b16 %v1770, %v1769
        %v1780 = vsel %vm1228, %v1740, 0
        %1782 = vmatpush.bf16.msra.mxu0 0
        %1783 = vmatpush.bf16.msra.mxu0 0
        %1784 = vmatpush.bf16.msra.mxu0 0
        %1785 = vmatpush.bf16.msra.mxu0 0
        %1786 = vmatpush.bf16.msra.mxu0 %v1774
        %1787 = vmatpush.bf16.msra.mxu0 %v1773
        %1788 = vmatpush.bf16.msra.mxu0 %v1772
        %1789 = vmatpush.bf16.msra.mxu0 %v1771
        %1790 = vmatmul.bf16.gmra.mxu0 %v1780
        %v1791 = vpop.f32.mrf.mxu0
        %v1792 = vadd.f32 %v1753, %v1791
        %v1793 = vpop.f32.mrf.mxu0
        %1794 = vdwg.mxu0
        %v1795 = vadd.f32 %v1691, %v1792
        %s1796 = scalar_lea.vmem %s18, 1
        %v1797 = vld [vmem:[%s1796] sm:$0x1]
        %s1798 = scalar_lea.vmem %s19, 1
        %v1799 = vld [vmem:[%s1798] sm:$0x1]
        %v1800 = vsel %vm696, %v1795, 0.0
        %1801 = vadd.xlane.f32.xlu0 %v1800
        %v1802 = vpop.xlane.xlu0 %1801
        %v1803 = vmul.f32 %v1802, %v706
        %v1804 = vsub.f32 %v1795, %v1803
        %v1805 = vmul.f32 %v1804, %v1804
        %v1806 = vsel %vm696, %v1805, 0.0
        %1807 = vadd.xlane.f32.xlu0 %v1806
        %v1808 = vpop.xlane.xlu0 %1807
        %v1809 = vmul.f32 %v1808, %v706
        %v1810 = vadd.f32 %v1809, 1e-12
        %v1811 = vrsqrt.pop %v1810
        %v1812 = vmul.f32 %v1811, %v1810
        %v1813 = vmul.f32 %v1812, %v1811
        %v1814 = vmul.f32 0.5, %v1813
        %v1815 = vsub.f32 1.5, %v1814
        %v1816 = vmul.f32 %v1811, %v1815
        %vm1817 = vweird.f32 %v1810
        %vm1818 = vweird.f32 %v1811
        %vm1819 = vmor %vm1817, %vm1818
        %v1820 = vsel %vm1819, %v1811, %v1816
        %v1821 = vmul.f32 %v1804, %v1820
        %v1823 = vperm.slane %v1797, 0
        %v1825 = vmul.f32 %v1821, %v1823
        %v1827 = vperm.slane %v1799, 0
        %v1829 = vadd.f32 %v1825, %v1827
        %v1830 = vpack.c.bf16 %v1829, %v1829
        %v1831 = vld [vmem:[%s20] sm:$0xf]
        %v1832 = vld [vmem:[%s20 + $0x4] sm:$0xf]
        %v1833 = vld [vmem:[%s20 + $0x8] sm:$0xf]
        %v1834 = vld [vmem:[%s20 + $0xc] sm:$0xf]
        %v1835 = vld [vmem:[%s21] sm:$0x1]
        %v1840 = vunpack.c.l.b16 %v1831
        %v1841 = vunpack.c.l.b16 %v1832
        %v1842 = vunpack.c.l.b16 %v1833
        %v1843 = vunpack.c.l.b16 %v1834
        %v1844 = vpack.c.b16 %v1841, %v1840
        %v1845 = vpack.c.b16 %v1843, %v1842
        %v1849 = vsel %vm696, %v1830, 0
        %1851 = vmatpush.bf16.msra.mxu0 0
        %1852 = vmatpush.bf16.msra.mxu0 0
        %1853 = vmatpush.bf16.msra.mxu0 0
        %1854 = vmatpush.bf16.msra.mxu0 0
        %1855 = vmatpush.bf16.msra.mxu0 0
        %1856 = vmatpush.bf16.msra.mxu0 0
        %1857 = vmatpush.bf16.msra.mxu0 %v1845
        %1858 = vmatpush.bf16.msra.mxu0 %v1844
        %1859 = vmatmul.bf16.gmra.mxu0 %v1849
        %v1860 = vpop.f32.mrf.mxu0
        %v1861 = vadd.f32 %v1835, %v1860
        %v1862 = vpop.f32.mrf.mxu0
        %1863 = vdwg.mxu0
        %v1864 = vtanh.pop %v1861
        %vm1865 = vcmask 253952
        %1866 = vst.msk [vmem:[%s684] sm:$0x1] %vm1865, %v1864
        %s1867 = sand.u32 %s516, 1
        %s1868 = scalar_lea.sflag [#allocation3], %s1867
        %s1869 = sand.u32 %s516, 1
        %s1870 = scalar_lea.vmem [#allocation2], %s1869
        // Predicated region
        $region109: #{tpu_custom_call.1} parent=107 // pred_check
          %p1871 = pneg %p526
        $region110: #{tpu_custom_call.1} parent=107 // pred_check_branch
          %1873 = sbr.rel (%p1871) target = $region112
        $region111: #{tpu_custom_call.1} parent=107 // pred_region
          %1875 = vsyncadd %s1868, 0
          %s1876 = scalar_lea.hbm %s22, %s36
          %s1878 = sshll.u32 %s1870, 4
          %s1879 = int_to_ptr.vmem [resolvable:$true] %s1878
          %s1880 = sshll.u32 %s1876, 4
          %s1881 = int_to_ptr.hbm [resolvable:$true] %s1880
          %1883 = dma.vmem_to_hbm [thread:$0]  %s1879, 16, %s1881, %s1868
        $region112: #{tpu_custom_call.1} parent=107 // pred_fallthru
          _
      $region108: #{tpu_custom_call.1} parent=5 // pred_fallthru
        _
      %p1884 = scmp.le.s32.totalorder 2, %s31
      // Predicated region
      $region113: #{tpu_custom_call.1} parent=5 // pred_check
        %p1885 = pneg %p1884
      $region114: #{tpu_custom_call.1} parent=5 // pred_check_branch
        %1887 = sbr.rel (%p1885) target = $region116
      $region115: #{tpu_custom_call.1} parent=5 // pred_region
        %s1888 = ssub.s32 %s31, 2
        // Predicated region
        $region117: #{tpu_custom_call.1} parent=115 // pred_check
          %p1889 = pneg %p532
        $region118: #{tpu_custom_call.1} parent=115 // pred_check_branch
          %1891 = sbr.rel (%p1889) target = $region120
        $region119: #{tpu_custom_call.1} parent=115 // pred_region
          %s1892 = sand.u32 %s517, 1
          %s1893 = scalar_lea.sflag [#allocation3], %s1892
          %s1894 = sand.u32 %s517, 1
          %s1895 = scalar_lea.vmem [#allocation2], %s1894
          %1897 = dma.done %s1893, 16
        $region120: #{tpu_custom_call.1} parent=115 // pred_fallthru
          _
      $region116: #{tpu_custom_call.1} parent=5 // pred_fallthru
        _
    $region6: #{tpu_custom_call.1} parent=1 // loop_footer
      %s35 = sadd.s32 1, %s31
    $region7: #{tpu_custom_call.1} parent=1 // loop_footer_branch
      %30 = sbr.rel target = $region3
    $region8: #{tpu_custom_call.1} parent=1 // loop_exit
      _
    %1898 = vsyncpa [#allocation3], 1
    %s1899 = scalar_lea.sflag [#allocation3], 1
    %1900 = vsyncpa %s1899, 1

</llo_original>
